<compile_context>
chip_gen: v5e
topology: v5e:2x2
jax: 0.10.0
libtpu: 0.0.40
codegen_flags: <defaults>
</compile_context>

<pallas_src>
import functools

import jax
import jax.numpy as jnp
from jax.experimental import pallas as pl
from jax.experimental.pallas import tpu as pltpu


def _round_up(x, m):
    return (x + m - 1) // m * m


def _pick_tile_rows(H, W, Wpp, Cin_p, Cout_p, KH, KW, out_itemsize, budget):
    """Largest multiple-of-8 row tile whose working set fits the VMEM budget."""
    h_cap = _round_up(max(H, 8), 8)
    th, best = 8, 8
    while th <= h_cap:
        x_win = 2 * (th + KH - 1) * Wpp * Cin_p * 2          # bf16, double buffer
        acc = 3 * th * Wpp * KW * Cout_p * 4                 # f32 partials (values)
        outb = 2 * th * W * Cout_p * out_itemsize            # pipelined out blocks
        wts = 2 * KH * Cin_p * KW * Cout_p * 2               # resident bf16 weights
        if x_win + acc + outb + wts > budget:
            break
        best = th
        th += 8
    return best


def conv_bn_relu_kernel(x_hbm, w_ref, b_ref, o_ref, x_win, sem, *,
                        TH, W, Wpp, KH, KW, Cin_p, Cout_p, RT):
    """One grid step = (batch n, row tile r): TH output rows, all channels.

    x_hbm : (N, Hp, Wpp, Cin_p)  padded bf16 image, left in HBM (pl.ANY)
    w_ref : (KH, Cin_p, KW*Cout_p) BN-folded bf16 weights, kw taps on lanes
    b_ref : (1, Cout_p)          folded BN/conv bias (f32)
    o_ref : (1, TH, W, Cout_p)   lane-dense output tile
    x_win : (2, TH+KH-1, Wpp, Cin_p) double-buffered halo-window scratch
    sem   : DMA semaphores, one per slot
    """
    n = pl.program_id(0)
    r = pl.program_id(1)
    THH = TH + KH - 1                      # rows per halo window
    rows = TH * Wpp                        # matmul M dimension

    def window_copy(row_tile, slot):
        return pltpu.make_async_copy(
            x_hbm.at[n, pl.ds(row_tile * TH, THH)],
            x_win.at[slot],
            sem.at[slot])

    slot = r & 1

    # Prime the pipeline on the first row tile of this batch element.
    @pl.when(r == 0)
    def _():
        window_copy(0, 0).start()

    # Prefetch the next row tile's halo window into the other slot.
    @pl.when(r + 1 < RT)
    def _():
        window_copy(r + 1, (r + 1) & 1).start()

    # Wait for the current window, then compute.
    window_copy(r, slot).wait()
    xw = x_win[slot]                                        # (THH, Wpp, Cin_p) bf16

    # KH fat MXU matmuls (kw taps concatenated on the lane axis); f32 accumulation
    # carried as values -> a single store, no accumulator read-modify-write.
    acc = None
    for kh in range(KH):
        x_mat = xw[kh:kh + TH].reshape(rows, Cin_p)
        part = jnp.dot(x_mat, w_ref[kh], preferred_element_type=jnp.float32)
        acc = part if acc is None else acc + part           # (rows, KW*Cout_p)

    # Combine the kw lane bands: band kw needs a -kw shift along the width
    # (sublane) axis.  pltpu.roll keeps this on the otherwise-idle XLU; the
    # wrapped / padded columns (w >= W) are discarded below, so the cyclic wrap
    # is harmless (Wpp >= W + KW - 1).
    y = acc[:, 0:Cout_p]
    for kw in range(1, KW):
        band = acc[:, kw * Cout_p:(kw + 1) * Cout_p]
        y = y + pltpu.roll(band, shift=rows - kw, axis=0)

    y = jnp.maximum(y + b_ref[...], 0.0)                    # bias + ReLU (f32, VPU)
    y = y.reshape(TH, Wpp, Cout_p)[:, 0:W, :]
    o_ref[...] = y.reshape(1, TH, W, Cout_p).astype(o_ref.dtype)


def conv_block_forward(x_nchw, weight, conv_bias, gamma, beta, running_mean,
                       running_var, eps=1e-5):
    """ConvBlock forward. Input/output in PyTorch NCHW convention."""
    N, Cin, H, W = x_nchw.shape
    Cout, _, KH, KW = weight.shape
    pad = 1
    assert KH == 3 and KW == 3 and pad == 1

    Cin_p = _round_up(Cin, 128)
    Cout_p = _round_up(Cout, 128)
    Wpp = _round_up(W + 2 * pad, 8)                 # >= W + 2, sublane aligned

    # Per-generation VMEM budget (v7x: 64 MiB/TC, v5e/v6e: 128 MiB).
    try:
        vmem_cap = int(pltpu.get_tpu_info().vmem_capacity_bytes)
    except Exception:
        vmem_cap = 64 * 1024 * 1024                 # conservative (v7x-sized) default
    vmem_limit = min(int(vmem_cap * 0.75), 100 * 1024 * 1024)
    budget = int(vmem_limit * 0.6)

    out_itemsize = jnp.dtype(x_nchw.dtype).itemsize
    TH = _pick_tile_rows(H, W, Wpp, Cin_p, Cout_p, KH, KW, out_itemsize, budget)
    RT = pl.cdiv(H, TH)
    Hout = RT * TH                                  # grid-aligned output rows
    Hp = Hout + 2 * pad                             # every halo window stays in-bounds

    # One fused layout pass: NCHW->NHWC, bf16 cast, halo + alignment + channel pad.
    x_nhwc = jnp.transpose(x_nchw, (0, 2, 3, 1)).astype(jnp.bfloat16)
    x_pad = jnp.pad(x_nhwc, ((0, 0), (pad, Hp - H - pad),
                             (pad, Wpp - W - pad), (0, Cin_p - Cin)))

    # Fold BN (eval) into the conv: scale into weights, one per-channel bias add.
    inv_std = 1.0 / jnp.sqrt(running_var + eps)
    scale = gamma * inv_std                                     # (Cout,)
    w_scaled = weight * scale[:, None, None, None]              # OIHW, BN-scaled
    w_khck = jnp.transpose(w_scaled, (2, 1, 3, 0))              # (KH, Cin, KW, Cout)
    w_khck = jnp.pad(w_khck, ((0, 0), (0, Cin_p - Cin),
                              (0, 0), (0, Cout_p - Cout)))
    w_cat = w_khck.reshape(KH, Cin_p, KW * Cout_p).astype(jnp.bfloat16)

    bias = beta + (conv_bias - running_mean) * scale            # (Cout,)
    bias_p = jnp.pad(bias, (0, Cout_p - Cout)).reshape(1, Cout_p).astype(jnp.float32)

    kernel = functools.partial(conv_bn_relu_kernel, TH=TH, W=W, Wpp=Wpp, KH=KH,
                               KW=KW, Cin_p=Cin_p, Cout_p=Cout_p, RT=RT)

    cost = pl.CostEstimate(
        flops=2 * N * Hout * Wpp * KH * Cin_p * KW * Cout_p,
        transcendentals=0,
        bytes_accessed=(x_pad.size * 2 + w_cat.size * 2
                        + N * Hout * W * Cout_p * out_itemsize))

    out_nhwc = pl.pallas_call(
        kernel,
        out_shape=jax.ShapeDtypeStruct((N, Hout, W, Cout_p), x_nchw.dtype),
        grid_spec=pltpu.PrefetchScalarGridSpec(
            num_scalar_prefetch=0,
            grid=(N, RT),
            in_specs=[
                pl.BlockSpec(memory_space=pl.ANY),              # x stays in HBM
                pl.BlockSpec((KH, Cin_p, KW * Cout_p), lambda n, r: (0, 0, 0)),
                pl.BlockSpec((1, Cout_p), lambda n, r: (0, 0)),
            ],
            out_specs=pl.BlockSpec((1, TH, W, Cout_p), lambda n, r: (n, r, 0, 0)),
            scratch_shapes=[
                pltpu.VMEM((2, TH + KH - 1, Wpp, Cin_p), jnp.bfloat16),
                pltpu.SemaphoreType.DMA((2,)),
            ]),
        compiler_params=pltpu.CompilerParams(
            dimension_semantics=("parallel", "arbitrary"),
            vmem_limit_bytes=vmem_limit),
        cost_estimate=cost,
    )(x_pad, w_cat, bias_p)

    # Drop row/channel padding, NHWC -> NCHW to match the PyTorch convention.
    return jnp.transpose(out_nhwc[:, :H, :, :Cout], (0, 3, 1, 2))


def _reference_forward(x_nchw, weight, conv_bias, gamma, beta, running_mean,
                       running_var, eps=1e-5):
    """Pure-JAX reference (lax conv) for correctness checking."""
    y = jax.lax.conv_general_dilated(
        x_nchw, weight, window_strides=(1, 1), padding=((1, 1), (1, 1)),
        dimension_numbers=("NCHW", "OIHW", "NCHW"))
    y = y + conv_bias.reshape(1, -1, 1, 1)
    inv_std = 1.0 / jnp.sqrt(running_var + eps)
    y = (y - running_mean.reshape(1, -1, 1, 1)) * (gamma * inv_std).reshape(1, -1, 1, 1) \
        + beta.reshape(1, -1, 1, 1)
    return jnp.maximum(y, 0.0)


if __name__ == "__main__":
    key = jax.random.PRNGKey(0)
    N, Cin, Cout, H, W = 2, 4, 8, 16, 16

    k_x, k_w, k_b, k_g, k_be, k_m, k_v = jax.random.split(key, 7)
    x = jax.random.normal(k_x, (N, Cin, H, W), dtype=jnp.float32)
    weight = jax.random.normal(k_w, (Cout, Cin, 3, 3), dtype=jnp.float32) * 0.1
    conv_bias = jax.random.normal(k_b, (Cout,), dtype=jnp.float32) * 0.1
    gamma = 1.0 + 0.1 * jax.random.normal(k_g, (Cout,), dtype=jnp.float32)
    beta = 0.1 * jax.random.normal(k_be, (Cout,), dtype=jnp.float32)
    running_mean = 0.1 * jax.random.normal(k_m, (Cout,), dtype=jnp.float32)
    running_var = jnp.abs(1.0 + 0.1 * jax.random.normal(k_v, (Cout,), dtype=jnp.float32))

    out = conv_block_forward(x, weight, conv_bias, gamma, beta,
                             running_mean, running_var)
    out = jax.block_until_ready(out)

    ref = _reference_forward(x, weight, conv_bias, gamma, beta,
                             running_mean, running_var)
    assert out.shape == (N, Cout, H, W)
    # bf16 MXU operands with f32 accumulation -> loosened tolerance vs f32 reference.
    assert jnp.allclose(out, ref, atol=5e-2, rtol=5e-2), "mismatch vs reference"

    print("KERNEL_OK")
</pallas_src>

<mosaic_0001>
module attributes {stable_mosaic.version = 11 : i64} {
  func.func @conv_bn_relu_kernel(%arg0: i32, %arg1: i32, %arg2: memref<2x18x24x128xbf16, #tpu.memory_space<any>>, %arg3: memref<3x128x384xbf16, #tpu.memory_space<vmem>>, %arg4: memref<1x128xf32, #tpu.memory_space<vmem>>, %arg5: memref<1x16x16x128xf32, #tpu.memory_space<vmem>>, %arg6: memref<2x18x24x128xbf16, #tpu.memory_space<vmem>>, %arg7: memref<2x!tpu.dma_semaphore, #tpu.memory_space<semaphore_mem>>) attributes {dimension_semantics = [#tpu.dimension_semantics<parallel>, #tpu.dimension_semantics<arbitrary>], iteration_bounds = array<i64: 2, 1>, scalar_prefetch = 0 : i64, scratch_operands = 2 : i64, tpu.core_type = #tpu.core_type<tc>, window_params = [{}, {pipeline_mode = #tpu.pipeline_mode<synchronous>, transform_indices = @transform_1, window_bounds = array<i64: 3, 128, 384>}, {pipeline_mode = #tpu.pipeline_mode<synchronous>, transform_indices = @transform_2, window_bounds = array<i64: 1, 128>}, {transform_indices = @transform_3, window_bounds = array<i64: 1, 16, 16, 128>}]} {
    %c1_i32 = arith.constant 1 : i32
    %0 = arith.andi %arg1, %c1_i32 : i32
    %c0_i32 = arith.constant 0 : i32
    %1 = arith.cmpi eq, %arg1, %c0_i32 : i32
    %2 = arith.extui %1 : i1 to i32
    %c0_i32_0 = arith.constant 0 : i32
    %3 = arith.cmpi ne, %2, %c0_i32_0 : i32
    scf.if %3 {
      %c0_i32_27 = arith.constant 0 : i32
      %c0_i32_28 = arith.constant 0 : i32
      %c0_i32_29 = arith.constant 0 : i32
      %c0_i32_30 = arith.constant 0 : i32
      %c0_i32_31 = arith.constant 0 : i32
      %51 = tpu.memref_slice %arg2[%arg0, %c0_i32_29, %c0_i32_30, %c0_i32_31] : memref<2x18x24x128xbf16, #tpu.memory_space<any>> -> memref<1x18x24x128xbf16, #tpu.memory_space<any>>
      %52 = tpu.memref_squeeze %51 : memref<1x18x24x128xbf16, #tpu.memory_space<any>> -> memref<18x24x128xbf16, #tpu.memory_space<any>>
      %c0_i32_32 = arith.constant 0 : i32
      %c0_i32_33 = arith.constant 0 : i32
      %c0_i32_34 = arith.constant 0 : i32
      %53 = tpu.memref_slice %arg6[%c0_i32_27, %c0_i32_32, %c0_i32_33, %c0_i32_34] : memref<2x18x24x128xbf16, #tpu.memory_space<vmem>> -> memref<1x18x24x128xbf16, #tpu.memory_space<vmem>>
      %54 = tpu.memref_squeeze %53 : memref<1x18x24x128xbf16, #tpu.memory_space<vmem>> -> memref<18x24x128xbf16, #tpu.memory_space<vmem>>
      %55 = tpu.memref_slice %arg7[%c0_i32_28] : memref<2x!tpu.dma_semaphore, #tpu.memory_space<semaphore_mem>> -> memref<1x!tpu.dma_semaphore, #tpu.memory_space<semaphore_mem>>
      %56 = tpu.memref_squeeze %55 : memref<1x!tpu.dma_semaphore, #tpu.memory_space<semaphore_mem>> -> memref<!tpu.dma_semaphore, #tpu.memory_space<semaphore_mem>>
      tpu.enqueue_dma source(%52 : memref<18x24x128xbf16, #tpu.memory_space<any>>) target(%54 : memref<18x24x128xbf16, #tpu.memory_space<vmem>>) target_semaphore(%56 : memref<!tpu.dma_semaphore, #tpu.memory_space<semaphore_mem>>)
    } else {
    }
    %c1_i32_1 = arith.constant 1 : i32
    %4 = arith.addi %arg1, %c1_i32_1 : i32
    %c1_i32_2 = arith.constant 1 : i32
    %5 = arith.cmpi slt, %4, %c1_i32_2 : i32
    %6 = arith.extui %5 : i1 to i32
    %c0_i32_3 = arith.constant 0 : i32
    %7 = arith.cmpi ne, %6, %c0_i32_3 : i32
    scf.if %7 {
      %c1_i32_27 = arith.constant 1 : i32
      %51 = arith.addi %arg1, %c1_i32_27 : i32
      %c1_i32_28 = arith.constant 1 : i32
      %52 = arith.addi %arg1, %c1_i32_28 : i32
      %c1_i32_29 = arith.constant 1 : i32
      %53 = arith.andi %52, %c1_i32_29 : i32
      %c16_i32_30 = arith.constant 16 : i32
      %54 = arith.muli %51, %c16_i32_30 : i32
      %c0_i32_31 = arith.constant 0 : i32
      %c0_i32_32 = arith.constant 0 : i32
      %55 = tpu.memref_slice %arg2[%arg0, %54, %c0_i32_31, %c0_i32_32] : memref<2x18x24x128xbf16, #tpu.memory_space<any>> -> memref<1x18x24x128xbf16, #tpu.memory_space<any>>
      %56 = tpu.memref_squeeze %55 : memref<1x18x24x128xbf16, #tpu.memory_space<any>> -> memref<18x24x128xbf16, #tpu.memory_space<any>>
      %c0_i32_33 = arith.constant 0 : i32
      %c0_i32_34 = arith.constant 0 : i32
      %c0_i32_35 = arith.constant 0 : i32
      %57 = tpu.memref_slice %arg6[%53, %c0_i32_33, %c0_i32_34, %c0_i32_35] : memref<2x18x24x128xbf16, #tpu.memory_space<vmem>> -> memref<1x18x24x128xbf16, #tpu.memory_space<vmem>>
      %58 = tpu.memref_squeeze %57 : memref<1x18x24x128xbf16, #tpu.memory_space<vmem>> -> memref<18x24x128xbf16, #tpu.memory_space<vmem>>
      %59 = tpu.memref_slice %arg7[%53] : memref<2x!tpu.dma_semaphore, #tpu.memory_space<semaphore_mem>> -> memref<1x!tpu.dma_semaphore, #tpu.memory_space<semaphore_mem>>
      %60 = tpu.memref_squeeze %59 : memref<1x!tpu.dma_semaphore, #tpu.memory_space<semaphore_mem>> -> memref<!tpu.dma_semaphore, #tpu.memory_space<semaphore_mem>>
      tpu.enqueue_dma source(%56 : memref<18x24x128xbf16, #tpu.memory_space<any>>) target(%58 : memref<18x24x128xbf16, #tpu.memory_space<vmem>>) target_semaphore(%60 : memref<!tpu.dma_semaphore, #tpu.memory_space<semaphore_mem>>)
    } else {
    }
    %c16_i32 = arith.constant 16 : i32
    %8 = arith.muli %arg1, %c16_i32 : i32
    %c0_i32_4 = arith.constant 0 : i32
    %c0_i32_5 = arith.constant 0 : i32
    %9 = tpu.memref_slice %arg2[%arg0, %8, %c0_i32_4, %c0_i32_5] : memref<2x18x24x128xbf16, #tpu.memory_space<any>> -> memref<1x18x24x128xbf16, #tpu.memory_space<any>>
    %10 = tpu.memref_squeeze %9 : memref<1x18x24x128xbf16, #tpu.memory_space<any>> -> memref<18x24x128xbf16, #tpu.memory_space<any>>
    %c0_i32_6 = arith.constant 0 : i32
    %c0_i32_7 = arith.constant 0 : i32
    %c0_i32_8 = arith.constant 0 : i32
    %11 = tpu.memref_slice %arg6[%0, %c0_i32_6, %c0_i32_7, %c0_i32_8] : memref<2x18x24x128xbf16, #tpu.memory_space<vmem>> -> memref<1x18x24x128xbf16, #tpu.memory_space<vmem>>
    %12 = tpu.memref_squeeze %11 : memref<1x18x24x128xbf16, #tpu.memory_space<vmem>> -> memref<18x24x128xbf16, #tpu.memory_space<vmem>>
    %13 = tpu.memref_slice %arg7[%0] : memref<2x!tpu.dma_semaphore, #tpu.memory_space<semaphore_mem>> -> memref<1x!tpu.dma_semaphore, #tpu.memory_space<semaphore_mem>>
    %14 = tpu.memref_squeeze %13 : memref<1x!tpu.dma_semaphore, #tpu.memory_space<semaphore_mem>> -> memref<!tpu.dma_semaphore, #tpu.memory_space<semaphore_mem>>
    tpu.wait_dma2 semaphore(%14 : memref<!tpu.dma_semaphore, #tpu.memory_space<semaphore_mem>>) src(%10 : memref<18x24x128xbf16, #tpu.memory_space<any>>) dst(%12 : memref<18x24x128xbf16, #tpu.memory_space<vmem>>)
    %15 = arith.index_cast %0 : i32 to index
    %c0 = arith.constant 0 : index
    %c0_9 = arith.constant 0 : index
    %c0_10 = arith.constant 0 : index
    %16 = vector.load %arg6[%15, %c0, %c0_9, %c0_10] : memref<2x18x24x128xbf16, #tpu.memory_space<vmem>>, vector<1x18x24x128xbf16>
    %17 = vector.shape_cast %16 : vector<1x18x24x128xbf16> to vector<18x24x128xbf16>
    %18 = vector.extract_strided_slice %17 {offsets = [0, 0, 0], sizes = [16, 24, 128], strides = [1, 1, 1]} : vector<18x24x128xbf16> to vector<16x24x128xbf16>
    %19 = vector.shape_cast %18 : vector<16x24x128xbf16> to vector<384x128xbf16>
    %c0_11 = arith.constant 0 : index
    %c0_12 = arith.constant 0 : index
    %c0_13 = arith.constant 0 : index
    %20 = vector.load %arg3[%c0_11, %c0_12, %c0_13] : memref<3x128x384xbf16, #tpu.memory_space<vmem>>, vector<1x128x384xbf16>
    %21 = vector.shape_cast %20 : vector<1x128x384xbf16> to vector<128x384xbf16>
    %cst = arith.constant dense<0.000000e+00> : vector<384x384xf32>
    %22 = tpu.matmul %19, %21, %cst {dimension_numbers = #tpu.dot_dimension_numbers<[1], [0], [0], [1], [0, 0, 1, 1], [], []>} : vector<384x128xbf16>, vector<128x384xbf16>, vector<384x384xf32> -> vector<384x384xf32>
    %23 = vector.extract_strided_slice %17 {offsets = [1, 0, 0], sizes = [16, 24, 128], strides = [1, 1, 1]} : vector<18x24x128xbf16> to vector<16x24x128xbf16>
    %24 = vector.shape_cast %23 : vector<16x24x128xbf16> to vector<384x128xbf16>
    %c1 = arith.constant 1 : index
    %c0_14 = arith.constant 0 : index
    %c0_15 = arith.constant 0 : index
    %25 = vector.load %arg3[%c1, %c0_14, %c0_15] : memref<3x128x384xbf16, #tpu.memory_space<vmem>>, vector<1x128x384xbf16>
    %26 = vector.shape_cast %25 : vector<1x128x384xbf16> to vector<128x384xbf16>
    %cst_16 = arith.constant dense<0.000000e+00> : vector<384x384xf32>
    %27 = tpu.matmul %24, %26, %cst_16 {dimension_numbers = #tpu.dot_dimension_numbers<[1], [0], [0], [1], [0, 0, 1, 1], [], []>} : vector<384x128xbf16>, vector<128x384xbf16>, vector<384x384xf32> -> vector<384x384xf32>
    %28 = arith.addf %22, %27 : vector<384x384xf32>
    %29 = vector.extract_strided_slice %17 {offsets = [2, 0, 0], sizes = [16, 24, 128], strides = [1, 1, 1]} : vector<18x24x128xbf16> to vector<16x24x128xbf16>
    %30 = vector.shape_cast %29 : vector<16x24x128xbf16> to vector<384x128xbf16>
    %c2 = arith.constant 2 : index
    %c0_17 = arith.constant 0 : index
    %c0_18 = arith.constant 0 : index
    %31 = vector.load %arg3[%c2, %c0_17, %c0_18] : memref<3x128x384xbf16, #tpu.memory_space<vmem>>, vector<1x128x384xbf16>
    %32 = vector.shape_cast %31 : vector<1x128x384xbf16> to vector<128x384xbf16>
    %cst_19 = arith.constant dense<0.000000e+00> : vector<384x384xf32>
    %33 = tpu.matmul %30, %32, %cst_19 {dimension_numbers = #tpu.dot_dimension_numbers<[1], [0], [0], [1], [0, 0, 1, 1], [], []>} : vector<384x128xbf16>, vector<128x384xbf16>, vector<384x384xf32> -> vector<384x384xf32>
    %34 = arith.addf %28, %33 : vector<384x384xf32>
    %35 = vector.extract_strided_slice %34 {offsets = [0, 0], sizes = [384, 128], strides = [1, 1]} : vector<384x384xf32> to vector<384x128xf32>
    %36 = vector.extract_strided_slice %34 {offsets = [0, 128], sizes = [384, 128], strides = [1, 1]} : vector<384x384xf32> to vector<384x128xf32>
    %c383_i32 = arith.constant 383 : i32
    %37 = tpu.dynamic_rotate %36 by %c383_i32 dim 0 : vector<384x128xf32>, i32 -> vector<384x128xf32>
    %38 = arith.addf %35, %37 : vector<384x128xf32>
    %39 = vector.extract_strided_slice %34 {offsets = [0, 256], sizes = [384, 128], strides = [1, 1]} : vector<384x384xf32> to vector<384x128xf32>
    %c382_i32 = arith.constant 382 : i32
    %40 = tpu.dynamic_rotate %39 by %c382_i32 dim 0 : vector<384x128xf32>, i32 -> vector<384x128xf32>
    %41 = arith.addf %38, %40 : vector<384x128xf32>
    %c0_20 = arith.constant 0 : index
    %c0_21 = arith.constant 0 : index
    %42 = vector.load %arg4[%c0_20, %c0_21] : memref<1x128xf32, #tpu.memory_space<vmem>>, vector<1x128xf32>
    %43 = vector.broadcast %42 : vector<1x128xf32> to vector<384x128xf32>
    %44 = arith.addf %41, %43 : vector<384x128xf32>
    %cst_22 = arith.constant 0.000000e+00 : f32
    %45 = vector.broadcast %cst_22 : f32 to vector<384x128xf32>
    %46 = arith.maximumf %44, %45 : vector<384x128xf32>
    %47 = vector.shape_cast %46 : vector<384x128xf32> to vector<16x24x128xf32>
    %48 = vector.extract_strided_slice %47 {offsets = [0, 0, 0], sizes = [16, 16, 128], strides = [1, 1, 1]} : vector<16x24x128xf32> to vector<16x16x128xf32>
    %49 = vector.shape_cast %48 : vector<16x16x128xf32> to vector<1x16x16x128xf32>
    %c0_23 = arith.constant 0 : index
    %c0_24 = arith.constant 0 : index
    %c0_25 = arith.constant 0 : index
    %c0_26 = arith.constant 0 : index
    %50 = vector.load %arg5[%c0_23, %c0_24, %c0_25, %c0_26] : memref<1x16x16x128xf32, #tpu.memory_space<vmem>>, vector<1x16x16x128xf32>
    tpu.vector_store %arg5[%c0_23, %c0_24, %c0_25, %c0_26], %49 {strides = array<i32>} : memref<1x16x16x128xf32, #tpu.memory_space<vmem>>, vector<1x16x16x128xf32>,
    return
  }
  func.func @transform_1(%arg0: i32, %arg1: i32) -> (i32, i32, i32) {
    %c0_i32 = arith.constant 0 : i32
    %c0_i32_0 = arith.constant 0 : i32
    %c0_i32_1 = arith.constant 0 : i32
    %c0_i32_2 = arith.constant 0 : i32
    return %c0_i32, %c0_i32_0, %c0_i32_1 : i32, i32, i32
  }
  func.func @transform_2(%arg0: i32, %arg1: i32) -> (i32, i32) {
    %c0_i32 = arith.constant 0 : i32
    %c0_i32_0 = arith.constant 0 : i32
    %c0_i32_1 = arith.constant 0 : i32
    return %c0_i32, %c0_i32_0 : i32, i32
  }
  func.func @transform_3(%arg0: i32, %arg1: i32) -> (i32, i32, i32, i32) {
    %c0_i32 = arith.constant 0 : i32
    %c0_i32_0 = arith.constant 0 : i32
    %c0_i32_1 = arith.constant 0 : i32
    return %arg0, %arg1, %c0_i32, %c0_i32_0 : i32, i32, i32, i32
  }
}

</mosaic_0001>

<llo_original>
// kernel: tpu_custom_call.1
$region0: #{tpu_custom_call.1}
  #allocation0 [shape = 'u32[]', space=smem, size = 0x4, offset = 0x4, fixed_abs, tag = 'smem constant byte address 0x4 - core index']
  #allocation1 [shape = 'u32[72,128]{1,0:T(1,128)}', space=vmem, size = 0x9000, scoped, tag = 'internal scratch']
  #allocation2 [shape = 'bf16[2,18,24,128]{3,2,1,0:T(8,128)(2,1)}', space=vmem, size = 0x36000, scoped, tag = 'scratch operand']
  #allocation3 [shape = 's32[2]{0}', space=sflag, size = 0x8, scoped, tag = 'scratch operand']
  #allocation8 [shape = 's32[]', space=sflag, size = 0x4, offset = 0, fixed_abs, tag = 'sflag constant byte address 0x0 - dummy sync flag']
  #allocation9 [shape = 's32[]', space=sflag, size = 0x4, offset = 0, fixed_abs, tag = 'sflag constant byte address 0x0 - dummy sync flag']
  #allocation10 [shape = 'u32[]', space=smem, size = 0x4, offset = 0x44, fixed_abs, tag = 'smem constant byte address 0x44 - assertion arg 0']
  #allocation11 [shape = 'u32[]', space=smem, size = 0x4, offset = 0x48, fixed_abs, tag = 'smem constant byte address 0x48 - assertion arg 1']
  #allocation12 [shape = 's32[]', space=sflag, size = 0x4, offset = 0, fixed_abs, tag = 'sflag constant byte address 0x0 - dummy sync flag']
  #allocation13 [shape = 's32[]', space=sflag, size = 0x4, offset = 0, fixed_abs, tag = 'sflag constant byte address 0x0 - dummy sync flag']
  %s0 = inlined_call_operand.hbm [shape: bf16[2,18,24,128], index: 0, kind: input, shape index: {}]
  %s1 = inlined_call_operand.hbm [shape: bf16[3,128,384], index: 1, kind: input, shape index: {}]
  %s2 = inlined_call_operand.vmem [shape: f32[1,128], index: 2, kind: input, shape index: {}]
  %s3 = inlined_call_operand.hbm [shape: f32[2,16,16,128], index: 3, kind: output, shape index: {}]
  %s4 = sld [smem:[#allocation0]]
  $region61: #{tpu_custom_call.1} parent=0
    _
  %s6 = ssub.s32 1, %s4
  %s7 = scalar_select 0, %s6, %s4
  $region1: #{tpu_custom_call.1} parent=0
    #allocation4 [shape = 'u8[294912]{0}', space=vmem, size = 0x48000, scoped, tag = 'input window, operand 1, single buffered']
    #allocation5 [shape = 's32[2]{0}', space=sflag, size = 0x8, scoped, tag = 'scoped memory for tpu_custom_call.1']
    #allocation6 [shape = 's32[2]{0}', space=sflag, size = 0x8, scoped, tag = 'scoped memory for tpu_custom_call.1']
    #allocation7 [shape = 'u8[262144]{0}', space=vmem, size = 0x40000, scoped, tag = 'output window, operand 0']
    %8 = vsyncpa [#allocation5], 0
    %9 = vsyncpa [#allocation6], 0
    %s10 = scalar_lea.sflag [#allocation6], 1
    %11 = vsyncpa %s10, 0
    loop: start=0, step=1, limit=4
    $region2: #{tpu_custom_call.1} parent=1 // loop_pre_header
      _
    $region3: #{tpu_custom_call.1} parent=1 // loop_header
      %s13 = sphi 0, %s17
      %p14 = scmp.ge.s32.totalorder %s13, 4
      %s20 = sphi 0, %s32
      %s21 = sphi 0, %s28
      %s22 = sphi 0, %s20
      %s23 = sphi 0, %s21
      %s24 = sphi 0, %s22
      %s25 = sphi 0, %s23
      %s33 = sphi 0, %s33
      %s35 = sphi 0, %s33
      %s36 = sphi 0, %s35
      %s50 = sphi 0, %s36
      %s54 = sphi 0, %s54
      %s56 = sphi 0, %s54
      %s57 = sphi 0, %s56
      %s71 = sphi 0, %s57
      %s79 = sphi 0, %s81
      %s82 = sphi 0, %s79
      %s83 = sphi 0, %s82
      %s99 = sphi 0, %s83
    $region4: #{tpu_custom_call.1} parent=1 // loop_header_branch
      %16 = sbr.rel (%p14) target = $region8
    $region5: #{tpu_custom_call.1} parent=1 // loop_body
      %s18 = ssub.s32 %s13, 1
      %s19 = ssub.s32 %s13, 2
      %s26 = sadd.s32 1, %s21
      %p27 = scmp.ge.s32.totalorder %s26, 1
      %s28 = scalar_select %p27, 0, %s26
      %s29 = sadd.s32 1, %s20
      %s30 = scalar_select %p27, %s29, %s20
      %p31 = scmp.ge.s32.totalorder %s30, 2
      %s32 = scalar_select %p31, 0, %s30
      %s34 = sadd.s32 %s33, 1
      %p37 = scmp.eq.s32.totalorder %s13, 1
      %p38 = scmp.ne.s32.totalorder %s33, %s35
      %p39 = scmp.eq.s32.totalorder %s13, 0
      %p40 = por %p38, %p39
      %p41 = scmp.ne.s32.totalorder %s33, %s35
      %p42 = scmp.eq.s32.totalorder %s18, 1
      %p43 = por %p41, %p42
      %p44 = scmp.ne.s32.totalorder %s35, %s36
      %p45 = scmp.eq.s32.totalorder %s18, 0
      %p46 = por %p44, %p45
      %p47 = scmp.ne.s32.totalorder %s35, %s36
      %p48 = scmp.eq.s32.totalorder %s19, 1
      %p49 = por %p47, %p48
      %p51 = scmp.ne.s32.totalorder %s36, %s50
      %p52 = scmp.eq.s32.totalorder %s19, 0
      %p53 = por %p51, %p52
      %s55 = sadd.s32 %s54, 1
      %p58 = scmp.eq.s32.totalorder %s13, 1
      %p59 = scmp.ne.s32.totalorder %s54, %s56
      %p60 = scmp.eq.s32.totalorder %s13, 0
      %p61 = por %p59, %p60
      %p62 = scmp.ne.s32.totalorder %s54, %s56
      %p63 = scmp.eq.s32.totalorder %s18, 1
      %p64 = por %p62, %p63
      %p65 = scmp.ne.s32.totalorder %s56, %s57
      %p66 = scmp.eq.s32.totalorder %s18, 0
      %p67 = por %p65, %p66
      %p68 = scmp.ne.s32.totalorder %s56, %s57
      %p69 = scmp.eq.s32.totalorder %s19, 1
      %p70 = por %p68, %p69
      %p72 = scmp.ne.s32.totalorder %s57, %s71
      %p73 = scmp.eq.s32.totalorder %s19, 0
      %p74 = por %p72, %p73
      %s75 = ssub.s32 %s20, %s32
      %s76 = ssub.s32 %s21, %s28
      %s77 = sor.u32 %s75, %s76
      %p78 = scmp.eq.s32.totalorder %s77, 0
      %s80 = sadd.s32 %s79, 1
      %s81 = scalar_select %p78, %s79, %s80
      %p84 = pneg %p78
      %p85 = scmp.eq.s32.totalorder %s13, 1
      %p86 = por %p84, %p85
      %p87 = scmp.ne.s32.totalorder %s79, %s82
      %p88 = scmp.eq.s32.totalorder %s13, 0
      %p89 = por %p87, %p88
      %p90 = scmp.ne.s32.totalorder %s79, %s82
      %p91 = scmp.eq.s32.totalorder %s18, 1
      %p92 = por %p90, %p91
      %p93 = scmp.ne.s32.totalorder %s82, %s83
      %p94 = scmp.eq.s32.totalorder %s18, 0
      %p95 = por %p93, %p94
      %p96 = scmp.ne.s32.totalorder %s82, %s83
      %p97 = scmp.eq.s32.totalorder %s19, 1
      %p98 = por %p96, %p97
      %p100 = scmp.ne.s32.totalorder %s83, %s99
      %p101 = scmp.eq.s32.totalorder %s19, 0
      %p102 = por %p100, %p101
      %p103 = scmp.le.s32.totalorder 1, %s13
      %p104 = scmp.lt.s32.totalorder %s13, 3
      %p105 = pnand %p103, %p104
      %p106 = pneg %p105
      // Predicated region
      $region9: #{tpu_custom_call.1} parent=5 // pred_check
        _
      $region10: #{tpu_custom_call.1} parent=5 // pred_check_branch
        %108 = sbr.rel (%p105) target = $region12
      $region11: #{tpu_custom_call.1} parent=5 // pred_region
        %s109 = ssub.s32 %s13, 1
        // Predicated region
        $region13: #{tpu_custom_call.1} parent=11 // pred_check
          %p110 = pneg %p46
        $region14: #{tpu_custom_call.1} parent=11 // pred_check_branch
          %112 = sbr.rel (%p110) target = $region16
        $region15: #{tpu_custom_call.1} parent=11 // pred_region
          %114 = vsyncadd [#allocation5], 0
          %s115 = sshll.u32 %s1, 4
          %s116 = int_to_ptr.hbm [resolvable:$true] %s115
          %s117 = sshll.u32 [#allocation4], 4
          %s118 = int_to_ptr.vmem [resolvable:$true] %s117
          %123 = dma.hbm_to_vmem [thread:$0]  %s116, 9216, %s118, [#allocation5], 192, 192, 12
        $region16: #{tpu_custom_call.1} parent=11 // pred_fallthru
          _
        // Predicated region
        $region17: #{tpu_custom_call.1} parent=11 // pred_check
          %p124 = pneg %p67
        $region18: #{tpu_custom_call.1} parent=11 // pred_check_branch
          %126 = sbr.rel (%p124) target = $region20
        $region19: #{tpu_custom_call.1} parent=11 // pred_region
          _
        $region20: #{tpu_custom_call.1} parent=11 // pred_fallthru
          _
      $region12: #{tpu_custom_call.1} parent=5 // pred_fallthru
        _
      %p127 = scmp.lt.s32.totalorder %s13, 2
      // Predicated region
      $region21: #{tpu_custom_call.1} parent=5 // pred_check
        %p128 = pneg %p127
      $region22: #{tpu_custom_call.1} parent=5 // pred_check_branch
        %130 = sbr.rel (%p128) target = $region24
      $region23: #{tpu_custom_call.1} parent=5 // pred_region
        _
      $region24: #{tpu_custom_call.1} parent=5 // pred_fallthru
        _
      %p131 = scmp.le.s32.totalorder 1, %s13
      %p132 = scmp.lt.s32.totalorder %s13, 3
      %p133 = pnand %p131, %p132
      %p134 = pneg %p133
      // Predicated region
      $region25: #{tpu_custom_call.1} parent=5 // pred_check
        _
      $region26: #{tpu_custom_call.1} parent=5 // pred_check_branch
        %136 = sbr.rel (%p133) target = $region28
      $region27: #{tpu_custom_call.1} parent=5 // pred_region
        %s137 = ssub.s32 %s13, 1
        // Predicated region
        $region29: #{tpu_custom_call.1} parent=27 // pred_check
          %p138 = pneg %p46
        $region30: #{tpu_custom_call.1} parent=27 // pred_check_branch
          %140 = sbr.rel (%p138) target = $region32
        $region31: #{tpu_custom_call.1} parent=27 // pred_region
          %142 = dma.done [#allocation5], 9216
        $region32: #{tpu_custom_call.1} parent=27 // pred_fallthru
          _
        %p143 = pneg %p46
        %p144 = pneg %p43
        %p145 = pneg %p67
        %p146 = pneg %p64
        %p147 = pneg %p95
        %p148 = pneg %p92
        %s149 = sand.u32 %s82, 1
        %s150 = scalar_lea.sflag [#allocation6], %s149
        %s151 = sand.u32 %s82, 1
        %s152 = smul.addr %s151, 256
        %s153 = scalar_lea.vmem [#allocation7], %s152
        %s154 = smul.u32 16, %s23
        %s155 = sand.u32 %s23, 1
        %p156 = scmp.eq.s32.totalorder %s23, 0
        // Predicated region
        $region33: #{tpu_custom_call.1} parent=27 // pred_check
          %p157 = pneg %p156
        $region34: #{tpu_custom_call.1} parent=27 // pred_check_branch
          %159 = sbr.rel (%p157) target = $region36
        $region35: #{tpu_custom_call.1} parent=27 // pred_region
          %s160 = smul.u32 %s22, 54
          %s161 = smul.addr %s160, 4
          %s162 = scalar_lea.hbm %s0, %s161
          // Predicated region
          $region37: #{tpu_custom_call.1} parent=35 // pred_check
            _
          $region38: #{tpu_custom_call.1} parent=35 // pred_check_branch
            %164 = sbr.rel target = $region40
          $region39: #{tpu_custom_call.1} parent=35 // pred_region
            %165 = sst [smem:[#allocation10]] [#allocation9]
            %166 = sst [smem:[#allocation11]] [#allocation8]
          $region40: #{tpu_custom_call.1} parent=35 // pred_fallthru
            _
          %168 = shalt.err (0)
          %s170 = sshll.u32 %s162, 4
          %s171 = int_to_ptr.hbm [resolvable:$true] %s170
          %s172 = sshll.u32 [#allocation2], 4
          %s173 = int_to_ptr.vmem [resolvable:$true] %s172
          %175 = dma.hbm_to_vmem [thread:$0]  %s171, 3456, %s173, [#allocation3]
        $region36: #{tpu_custom_call.1} parent=27 // pred_fallthru
          _
        %s176 = sadd.s32 %s23, 1
        %p177 = scmp.lt.s32.totalorder %s176, 1
        // Predicated region
        $region41: #{tpu_custom_call.1} parent=27 // pred_check
          %p178 = pneg %p177
        $region42: #{tpu_custom_call.1} parent=27 // pred_check_branch
          %180 = sbr.rel (%p178) target = $region44
        $region43: #{tpu_custom_call.1} parent=27 // pred_region
          %s181 = sand.u32 %s176, 1
          %s182 = smul.u32 %s176, 16
          %s183 = smul.u32 %s182, 3
          %s184 = smul.u32 %s22, 54
          %s185 = sadd.s32 %s183, %s184
          %s186 = smul.addr %s185, 4
          %s187 = scalar_lea.hbm %s0, %s186
          %s188 = smul.u32 %s181, 54
          %s189 = smul.addr %s188, 4
          %s190 = scalar_lea.vmem [#allocation2], %s189
          %s191 = scalar_lea.sflag [#allocation3], %s181
          // Predicated region
          $region45: #{tpu_custom_call.1} parent=43 // pred_check
            _
          $region46: #{tpu_custom_call.1} parent=43 // pred_check_branch
            %193 = sbr.rel target = $region48
          $region47: #{tpu_custom_call.1} parent=43 // pred_region
            %194 = sst [smem:[#allocation10]] [#allocation13]
            %195 = sst [smem:[#allocation11]] [#allocation12]
          $region48: #{tpu_custom_call.1} parent=43 // pred_fallthru
            _
          %197 = shalt.err (0)
          %s199 = sshll.u32 %s187, 4
          %s200 = int_to_ptr.hbm [resolvable:$true] %s199
          %s201 = sshll.u32 %s190, 4
          %s202 = int_to_ptr.vmem [resolvable:$true] %s201
          %204 = dma.hbm_to_vmem [thread:$0]  %s200, 3456, %s202, %s191
        $region44: #{tpu_custom_call.1} parent=27 // pred_fallthru
          _
        %s205 = smul.u32 %s155, 54
        %s206 = smul.addr %s205, 4
        %s207 = scalar_lea.vmem [#allocation2], %s206
        %s208 = scalar_lea.sflag [#allocation3], %s155
        %s209 = smul.u32 4, 18
        %s210 = smul.u32 %s209, 3
        %s211 = smul.u32 %s210, 1
        %s212 = sshll.u32 %s211, 4
        %213 = dma.done %s208, %s212
        %v214 = vld [vmem:[%s207] sm:$0xf]
        %v215 = vld [vmem:[%s207 + $0x4] sm:$0xf]
        %v216 = vld [vmem:[%s207 + $0x8] sm:$0xf]
        %v217 = vld [vmem:[%s207 + $0xc] sm:$0xf]
        %v218 = vld [vmem:[%s207 + $0x10] sm:$0xf]
        %v219 = vld [vmem:[%s207 + $0x14] sm:$0xf]
        %v220 = vld [vmem:[%s207 + $0x18] sm:$0xf]
        %v221 = vld [vmem:[%s207 + $0x1c] sm:$0xf]
        %v222 = vld [vmem:[%s207 + $0x20] sm:$0xf]
        %v223 = vld [vmem:[%s207 + $0x24] sm:$0xf]
        %v224 = vld [vmem:[%s207 + $0x28] sm:$0xf]
        %v225 = vld [vmem:[%s207 + $0x2c] sm:$0xf]
        %v226 = vld [vmem:[%s207 + $0x30] sm:$0xf]
        %v227 = vld [vmem:[%s207 + $0x34] sm:$0xf]
        %v228 = vld [vmem:[%s207 + $0x38] sm:$0xf]
        %v229 = vld [vmem:[%s207 + $0x3c] sm:$0xf]
        %v230 = vld [vmem:[%s207 + $0x40] sm:$0xf]
        %v231 = vld [vmem:[%s207 + $0x44] sm:$0xf]
        %v232 = vld [vmem:[%s207 + $0x48] sm:$0xf]
        %v233 = vld [vmem:[%s207 + $0x4c] sm:$0xf]
        %v234 = vld [vmem:[%s207 + $0x50] sm:$0xf]
        %v235 = vld [vmem:[%s207 + $0x54] sm:$0xf]
        %v236 = vld [vmem:[%s207 + $0x58] sm:$0xf]
        %v237 = vld [vmem:[%s207 + $0x5c] sm:$0xf]
        %v238 = vld [vmem:[%s207 + $0x60] sm:$0xf]
        %v239 = vld [vmem:[%s207 + $0x64] sm:$0xf]
        %v240 = vld [vmem:[%s207 + $0x68] sm:$0xf]
        %v241 = vld [vmem:[%s207 + $0x6c] sm:$0xf]
        %v242 = vld [vmem:[%s207 + $0x70] sm:$0xf]
        %v243 = vld [vmem:[%s207 + $0x74] sm:$0xf]
        %v244 = vld [vmem:[%s207 + $0x78] sm:$0xf]
        %v245 = vld [vmem:[%s207 + $0x7c] sm:$0xf]
        %v246 = vld [vmem:[%s207 + $0x80] sm:$0xf]
        %v247 = vld [vmem:[%s207 + $0x84] sm:$0xf]
        %v248 = vld [vmem:[%s207 + $0x88] sm:$0xf]
        %v249 = vld [vmem:[%s207 + $0x8c] sm:$0xf]
        %v250 = vld [vmem:[%s207 + $0x90] sm:$0xf]
        %v251 = vld [vmem:[%s207 + $0x94] sm:$0xf]
        %v252 = vld [vmem:[%s207 + $0x98] sm:$0xf]
        %v253 = vld [vmem:[%s207 + $0x9c] sm:$0xf]
        %v254 = vld [vmem:[%s207 + $0xa0] sm:$0xf]
        %v255 = vld [vmem:[%s207 + $0xa4] sm:$0xf]
        %v256 = vld [vmem:[%s207 + $0xa8] sm:$0xf]
        %v257 = vld [vmem:[%s207 + $0xac] sm:$0xf]
        %v258 = vld [vmem:[%s207 + $0xb0] sm:$0xf]
        %v259 = vld [vmem:[%s207 + $0xb4] sm:$0xf]
        %v260 = vld [vmem:[%s207 + $0xb8] sm:$0xf]
        %v261 = vld [vmem:[%s207 + $0xbc] sm:$0xf]
        %v262 = vld [vmem:[%s207 + $0xc0] sm:$0xf]
        %v263 = vld [vmem:[%s207 + $0xc4] sm:$0xf]
        %v264 = vld [vmem:[%s207 + $0xc8] sm:$0xf]
        %v265 = vld [vmem:[%s207 + $0xcc] sm:$0xf]
        %v266 = vld [vmem:[%s207 + $0xd0] sm:$0xf]
        %v267 = vld [vmem:[%s207 + $0xd4] sm:$0xf]
        %v268 = vld [vmem:[#allocation4] sm:$0xff]
        %v269 = vld [vmem:[#allocation4 + $0x8] sm:$0xf]
        %v270 = vld [vmem:[#allocation4 + $0xc] sm:$0xff]
        %v271 = vld [vmem:[#allocation4 + $0x14] sm:$0xf]
        %v272 = vld [vmem:[#allocation4 + $0x18] sm:$0xff]
        %v273 = vld [vmem:[#allocation4 + $0x20] sm:$0xf]
        %v274 = vld [vmem:[#allocation4 + $0x24] sm:$0xff]
        %v275 = vld [vmem:[#allocation4 + $0x2c] sm:$0xf]
        %v276 = vld [vmem:[#allocation4 + $0x30] sm:$0xff]
        %v277 = vld [vmem:[#allocation4 + $0x38] sm:$0xf]
        %v278 = vld [vmem:[#allocation4 + $0x3c] sm:$0xff]
        %v279 = vld [vmem:[#allocation4 + $0x44] sm:$0xf]
        %v280 = vld [vmem:[#allocation4 + $0x48] sm:$0xff]
        %v281 = vld [vmem:[#allocation4 + $0x50] sm:$0xf]
        %v282 = vld [vmem:[#allocation4 + $0x54] sm:$0xff]
        %v283 = vld [vmem:[#allocation4 + $0x5c] sm:$0xf]
        %v284 = vld [vmem:[#allocation4 + $0x60] sm:$0xff]
        %v285 = vld [vmem:[#allocation4 + $0x68] sm:$0xf]
        %v286 = vld [vmem:[#allocation4 + $0x6c] sm:$0xff]
        %v287 = vld [vmem:[#allocation4 + $0x74] sm:$0xf]
        %v288 = vld [vmem:[#allocation4 + $0x78] sm:$0xff]
        %v289 = vld [vmem:[#allocation4 + $0x80] sm:$0xf]
        %v290 = vld [vmem:[#allocation4 + $0x84] sm:$0xff]
        %v291 = vld [vmem:[#allocation4 + $0x8c] sm:$0xf]
        %v292 = vld [vmem:[#allocation4 + $0x90] sm:$0xff]
        %v293 = vld [vmem:[#allocation4 + $0x98] sm:$0xf]
        %v294 = vld [vmem:[#allocation4 + $0x9c] sm:$0xff]
        %v295 = vld [vmem:[#allocation4 + $0xa4] sm:$0xf]
        %v296 = vld [vmem:[#allocation4 + $0xa8] sm:$0xff]
        %v297 = vld [vmem:[#allocation4 + $0xb0] sm:$0xf]
        %v298 = vld [vmem:[#allocation4 + $0xb4] sm:$0xff]
        %v299 = vld [vmem:[#allocation4 + $0xbc] sm:$0xf]
        %s300 = scalar_lea.vmem [#allocation4], 192
        %v301 = vld [vmem:[%s300] sm:$0xff]
        %v302 = vld [vmem:[%s300 + $0x8] sm:$0xf]
        %v303 = vld [vmem:[%s300 + $0xc] sm:$0xff]
        %v304 = vld [vmem:[%s300 + $0x14] sm:$0xf]
        %v305 = vld [vmem:[%s300 + $0x18] sm:$0xff]
        %v306 = vld [vmem:[%s300 + $0x20] sm:$0xf]
        %v307 = vld [vmem:[%s300 + $0x24] sm:$0xff]
        %v308 = vld [vmem:[%s300 + $0x2c] sm:$0xf]
        %v309 = vld [vmem:[%s300 + $0x30] sm:$0xff]
        %v310 = vld [vmem:[%s300 + $0x38] sm:$0xf]
        %v311 = vld [vmem:[%s300 + $0x3c] sm:$0xff]
        %v312 = vld [vmem:[%s300 + $0x44] sm:$0xf]
        %v313 = vld [vmem:[%s300 + $0x48] sm:$0xff]
        %v314 = vld [vmem:[%s300 + $0x50] sm:$0xf]
        %v315 = vld [vmem:[%s300 + $0x54] sm:$0xff]
        %v316 = vld [vmem:[%s300 + $0x5c] sm:$0xf]
        %v317 = vld [vmem:[%s300 + $0x60] sm:$0xff]
        %v318 = vld [vmem:[%s300 + $0x68] sm:$0xf]
        %v319 = vld [vmem:[%s300 + $0x6c] sm:$0xff]
        %v320 = vld [vmem:[%s300 + $0x74] sm:$0xf]
        %v321 = vld [vmem:[%s300 + $0x78] sm:$0xff]
        %v322 = vld [vmem:[%s300 + $0x80] sm:$0xf]
        %v323 = vld [vmem:[%s300 + $0x84] sm:$0xff]
        %v324 = vld [vmem:[%s300 + $0x8c] sm:$0xf]
        %v325 = vld [vmem:[%s300 + $0x90] sm:$0xff]
        %v326 = vld [vmem:[%s300 + $0x98] sm:$0xf]
        %v327 = vld [vmem:[%s300 + $0x9c] sm:$0xff]
        %v328 = vld [vmem:[%s300 + $0xa4] sm:$0xf]
        %v329 = vld [vmem:[%s300 + $0xa8] sm:$0xff]
        %v330 = vld [vmem:[%s300 + $0xb0] sm:$0xf]
        %v331 = vld [vmem:[%s300 + $0xb4] sm:$0xff]
        %v332 = vld [vmem:[%s300 + $0xbc] sm:$0xf]
        %v381 = vunpack.c.l.b16 %v217
        %v382 = vunpack.c.l.b16 %v218
        %v383 = vunpack.c.l.b16 %v219
        %v384 = vunpack.c.l.b16 %v220
        %v385 = vunpack.c.l.b16 %v221
        %v386 = vunpack.c.l.b16 %v222
        %v387 = vunpack.c.l.b16 %v223
        %v388 = vunpack.c.l.b16 %v224
        %v389 = vunpack.c.l.b16 %v225
        %v390 = vunpack.c.l.b16 %v226
        %v391 = vunpack.c.l.b16 %v227
        %v392 = vunpack.c.l.b16 %v228
        %v393 = vunpack.c.l.b16 %v229
        %v394 = vunpack.c.l.b16 %v230
        %v395 = vunpack.c.l.b16 %v231
        %v396 = vunpack.c.l.b16 %v232
        %v397 = vunpack.c.l.b16 %v233
        %v398 = vunpack.c.l.b16 %v234
        %v399 = vunpack.c.l.b16 %v235
        %v400 = vunpack.c.l.b16 %v236
        %v401 = vunpack.c.l.b16 %v237
        %v402 = vunpack.c.l.b16 %v238
        %v403 = vunpack.c.l.b16 %v239
        %v404 = vunpack.c.l.b16 %v240
        %v405 = vunpack.c.l.b16 %v241
        %v406 = vunpack.c.l.b16 %v242
        %v407 = vunpack.c.l.b16 %v243
        %v408 = vunpack.c.l.b16 %v244
        %v409 = vunpack.c.l.b16 %v245
        %v410 = vunpack.c.l.b16 %v246
        %v411 = vunpack.c.l.b16 %v247
        %v412 = vunpack.c.l.b16 %v248
        %v413 = vunpack.c.l.b16 %v249
        %v414 = vunpack.c.l.b16 %v250
        %v415 = vunpack.c.l.b16 %v251
        %v416 = vunpack.c.l.b16 %v252
        %v417 = vunpack.c.l.b16 %v253
        %v418 = vunpack.c.l.b16 %v254
        %v419 = vunpack.c.l.b16 %v255
        %v420 = vunpack.c.l.b16 %v256
        %v421 = vunpack.c.l.b16 %v257
        %v422 = vunpack.c.l.b16 %v258
        %v423 = vunpack.c.l.b16 %v259
        %v424 = vunpack.c.l.b16 %v260
        %v425 = vunpack.c.l.b16 %v261
        %v426 = vunpack.c.l.b16 %v262
        %v427 = vunpack.c.l.b16 %v263
        %v428 = vunpack.c.l.b16 %v264
        %v429 = vpack.c.b16 %v382, %v381
        %v430 = vpack.c.b16 %v384, %v383
        %v431 = vpack.c.b16 %v386, %v385
        %v432 = vpack.c.b16 %v388, %v387
        %v433 = vpack.c.b16 %v390, %v389
        %v434 = vpack.c.b16 %v392, %v391
        %v435 = vpack.c.b16 %v394, %v393
        %v436 = vpack.c.b16 %v396, %v395
        %v437 = vpack.c.b16 %v398, %v397
        %v438 = vpack.c.b16 %v400, %v399
        %v439 = vpack.c.b16 %v402, %v401
        %v440 = vpack.c.b16 %v404, %v403
        %v441 = vpack.c.b16 %v406, %v405
        %v442 = vpack.c.b16 %v408, %v407
        %v443 = vpack.c.b16 %v410, %v409
        %v444 = vpack.c.b16 %v412, %v411
        %v445 = vpack.c.b16 %v414, %v413
        %v446 = vpack.c.b16 %v416, %v415
        %v447 = vpack.c.b16 %v418, %v417
        %v448 = vpack.c.b16 %v420, %v419
        %v449 = vpack.c.b16 %v422, %v421
        %v450 = vpack.c.b16 %v424, %v423
        %v451 = vpack.c.b16 %v426, %v425
        %v452 = vpack.c.b16 %v428, %v427
        %v509 = vunpack.c.l.b16 %v301
        %v510 = vunpack.c.h.b16 %v301
        %v511 = vunpack.c.l.b16 %v302
        %v512 = vunpack.c.l.b16 %v303
        %v513 = vunpack.c.h.b16 %v303
        %v514 = vunpack.c.l.b16 %v304
        %v515 = vunpack.c.l.b16 %v305
        %v516 = vunpack.c.h.b16 %v305
        %v517 = vunpack.c.l.b16 %v306
        %v518 = vunpack.c.l.b16 %v307
        %v519 = vunpack.c.h.b16 %v307
        %v520 = vunpack.c.l.b16 %v308
        %v521 = vunpack.c.l.b16 %v309
        %v522 = vunpack.c.h.b16 %v309
        %v523 = vunpack.c.l.b16 %v310
        %v524 = vunpack.c.l.b16 %v311
        %v525 = vunpack.c.h.b16 %v311
        %v526 = vunpack.c.l.b16 %v312
        %v527 = vunpack.c.l.b16 %v313
        %v528 = vunpack.c.h.b16 %v313
        %v529 = vunpack.c.l.b16 %v314
        %v530 = vunpack.c.l.b16 %v315
        %v531 = vunpack.c.h.b16 %v315
        %v532 = vunpack.c.l.b16 %v316
        %v533 = vunpack.c.l.b16 %v317
        %v534 = vunpack.c.h.b16 %v317
        %v535 = vunpack.c.l.b16 %v318
        %v536 = vunpack.c.l.b16 %v319
        %v537 = vunpack.c.h.b16 %v319
        %v538 = vunpack.c.l.b16 %v320
        %v539 = vunpack.c.l.b16 %v321
        %v540 = vunpack.c.h.b16 %v321
        %v541 = vunpack.c.l.b16 %v322
        %v542 = vunpack.c.l.b16 %v323
        %v543 = vunpack.c.h.b16 %v323
        %v544 = vunpack.c.l.b16 %v324
        %v545 = vunpack.c.l.b16 %v325
        %v546 = vunpack.c.h.b16 %v325
        %v547 = vunpack.c.l.b16 %v326
        %v548 = vunpack.c.l.b16 %v327
        %v549 = vunpack.c.h.b16 %v327
        %v550 = vunpack.c.l.b16 %v328
        %v551 = vunpack.c.l.b16 %v329
        %v552 = vunpack.c.h.b16 %v329
        %v553 = vunpack.c.l.b16 %v330
        %v554 = vunpack.c.l.b16 %v331
        %v555 = vunpack.c.h.b16 %v331
        %v556 = vunpack.c.l.b16 %v332
        %v557 = vpack.c.b16 %v512, %v509
        %v558 = vpack.c.b16 %v513, %v510
        %v559 = vpack.c.b16 %v514, %v511
        %v560 = vpack.c.b16 %v518, %v515
        %v561 = vpack.c.b16 %v519, %v516
        %v562 = vpack.c.b16 %v520, %v517
        %v563 = vpack.c.b16 %v524, %v521
        %v564 = vpack.c.b16 %v525, %v522
        %v565 = vpack.c.b16 %v526, %v523
        %v566 = vpack.c.b16 %v530, %v527
        %v567 = vpack.c.b16 %v531, %v528
        %v568 = vpack.c.b16 %v532, %v529
        %v569 = vpack.c.b16 %v536, %v533
        %v570 = vpack.c.b16 %v537, %v534
        %v571 = vpack.c.b16 %v538, %v535
        %v572 = vpack.c.b16 %v542, %v539
        %v573 = vpack.c.b16 %v543, %v540
        %v574 = vpack.c.b16 %v544, %v541
        %v575 = vpack.c.b16 %v548, %v545
        %v576 = vpack.c.b16 %v549, %v546
        %v577 = vpack.c.b16 %v550, %v547
        %v578 = vpack.c.b16 %v554, %v551
        %v579 = vpack.c.b16 %v555, %v552
        %v580 = vpack.c.b16 %v556, %v553
        %605 = vmatpush.bf16.msra.mxu0 %v578
        %606 = vmatpush.bf16.msra.mxu0 %v575
        %607 = vmatpush.bf16.msra.mxu0 %v572
        %608 = vmatpush.bf16.msra.mxu0 %v569
        %609 = vmatpush.bf16.msra.mxu0 %v566
        %610 = vmatpush.bf16.msra.mxu0 %v563
        %611 = vmatpush.bf16.msra.mxu0 %v560
        %612 = vmatpush.bf16.msra.mxu0 %v557
        %613 = vmatmul.bf16.gmra.mxu0 %v429
        %v614 = vpop.f32.mrf.mxu0
        %v615 = vadd.f32 0.0, %v614
        %v616 = vpop.f32.mrf.mxu0
        %v617 = vadd.f32 0.0, %v616
        %618 = vmatmul.bf16.gmra.mxu0 %v430
        %v619 = vpop.f32.mrf.mxu0
        %v620 = vpop.f32.mrf.mxu0
        %v621 = vadd.f32 0.0, %v620
        %622 = vmatmul.bf16.gmra.mxu0 %v431
        %v623 = vpop.f32.mrf.mxu0
        %v624 = vadd.f32 0.0, %v623
        %v625 = vpop.f32.mrf.mxu0
        %626 = vmatmul.bf16.gmra.mxu0 %v432
        %v627 = vpop.f32.mrf.mxu0
        %v628 = vadd.f32 0.0, %v627
        %v629 = vpop.f32.mrf.mxu0
        %v630 = vadd.f32 0.0, %v629
        %631 = vmatmul.bf16.gmra.mxu0 %v433
        %v632 = vpop.f32.mrf.mxu0
        %v633 = vpop.f32.mrf.mxu0
        %v634 = vadd.f32 0.0, %v633
        %635 = vmatmul.bf16.gmra.mxu0 %v434
        %v636 = vpop.f32.mrf.mxu0
        %v637 = vadd.f32 0.0, %v636
        %v638 = vpop.f32.mrf.mxu0
        %639 = vmatmul.bf16.gmra.mxu0 %v435
        %v640 = vpop.f32.mrf.mxu0
        %v641 = vadd.f32 0.0, %v640
        %v642 = vpop.f32.mrf.mxu0
        %v643 = vadd.f32 0.0, %v642
        %644 = vmatmul.bf16.gmra.mxu0 %v436
        %v645 = vpop.f32.mrf.mxu0
        %v646 = vpop.f32.mrf.mxu0
        %v647 = vadd.f32 0.0, %v646
        %648 = vmatmul.bf16.gmra.mxu0 %v437
        %v649 = vpop.f32.mrf.mxu0
        %v650 = vadd.f32 0.0, %v649
        %v651 = vpop.f32.mrf.mxu0
        %652 = vmatmul.bf16.gmra.mxu0 %v438
        %v653 = vpop.f32.mrf.mxu0
        %v654 = vadd.f32 0.0, %v653
        %v655 = vpop.f32.mrf.mxu0
        %v656 = vadd.f32 0.0, %v655
        %657 = vmatmul.bf16.gmra.mxu0 %v439
        %v658 = vpop.f32.mrf.mxu0
        %v659 = vpop.f32.mrf.mxu0
        %v660 = vadd.f32 0.0, %v659
        %661 = vmatmul.bf16.gmra.mxu0 %v440
        %v662 = vpop.f32.mrf.mxu0
        %v663 = vadd.f32 0.0, %v662
        %v664 = vpop.f32.mrf.mxu0
        %665 = vmatmul.bf16.gmra.mxu0 %v441
        %v666 = vpop.f32.mrf.mxu0
        %v667 = vadd.f32 0.0, %v666
        %v668 = vpop.f32.mrf.mxu0
        %v669 = vadd.f32 0.0, %v668
        %670 = vmatmul.bf16.gmra.mxu0 %v442
        %v671 = vpop.f32.mrf.mxu0
        %v672 = vpop.f32.mrf.mxu0
        %v673 = vadd.f32 0.0, %v672
        %674 = vmatmul.bf16.gmra.mxu0 %v443
        %v675 = vpop.f32.mrf.mxu0
        %v676 = vadd.f32 0.0, %v675
        %v677 = vpop.f32.mrf.mxu0
        %678 = vmatmul.bf16.gmra.mxu0 %v444
        %v679 = vpop.f32.mrf.mxu0
        %v680 = vadd.f32 0.0, %v679
        %v681 = vpop.f32.mrf.mxu0
        %v682 = vadd.f32 0.0, %v681
        %683 = vmatmul.bf16.gmra.mxu0 %v445
        %v684 = vpop.f32.mrf.mxu0
        %v685 = vpop.f32.mrf.mxu0
        %v686 = vadd.f32 0.0, %v685
        %687 = vmatmul.bf16.gmra.mxu0 %v446
        %v688 = vpop.f32.mrf.mxu0
        %v689 = vadd.f32 0.0, %v688
        %v690 = vpop.f32.mrf.mxu0
        %691 = vmatmul.bf16.gmra.mxu0 %v447
        %v692 = vpop.f32.mrf.mxu0
        %v693 = vadd.f32 0.0, %v692
        %v694 = vpop.f32.mrf.mxu0
        %v695 = vadd.f32 0.0, %v694
        %696 = vmatmul.bf16.gmra.mxu0 %v448
        %v697 = vpop.f32.mrf.mxu0
        %v698 = vpop.f32.mrf.mxu0
        %v699 = vadd.f32 0.0, %v698
        %700 = vmatmul.bf16.gmra.mxu0 %v449
        %v701 = vpop.f32.mrf.mxu0
        %v702 = vadd.f32 0.0, %v701
        %v703 = vpop.f32.mrf.mxu0
        %704 = vmatmul.bf16.gmra.mxu0 %v450
        %v705 = vpop.f32.mrf.mxu0
        %v706 = vadd.f32 0.0, %v705
        %v707 = vpop.f32.mrf.mxu0
        %v708 = vadd.f32 0.0, %v707
        %709 = vmatmul.bf16.gmra.mxu0 %v451
        %v710 = vpop.f32.mrf.mxu0
        %v711 = vpop.f32.mrf.mxu0
        %v712 = vadd.f32 0.0, %v711
        %713 = vmatmul.bf16.gmra.mxu0 %v452
        %v714 = vpop.f32.mrf.mxu0
        %v715 = vadd.f32 0.0, %v714
        %v716 = vpop.f32.mrf.mxu0
        %717 = vdwg.mxu0
        %718 = vmatpush.bf16.msra.mxu0 %v579
        %719 = vmatpush.bf16.msra.mxu0 %v576
        %720 = vmatpush.bf16.msra.mxu0 %v573
        %721 = vmatpush.bf16.msra.mxu0 %v570
        %722 = vmatpush.bf16.msra.mxu0 %v567
        %723 = vmatpush.bf16.msra.mxu0 %v564
        %724 = vmatpush.bf16.msra.mxu0 %v561
        %725 = vmatpush.bf16.msra.mxu0 %v558
        %726 = vmatmul.bf16.gmra.mxu0 %v429
        %v727 = vpop.f32.mrf.mxu0
        %v728 = vadd.f32 0.0, %v727
        %v729 = vpop.f32.mrf.mxu0
        %v730 = vadd.f32 0.0, %v729
        %731 = vmatmul.bf16.gmra.mxu0 %v430
        %v732 = vpop.f32.mrf.mxu0
        %v733 = vadd.f32 0.0, %v732
        %v734 = vpop.f32.mrf.mxu0
        %v735 = vadd.f32 0.0, %v734
        %736 = vmatmul.bf16.gmra.mxu0 %v431
        %v737 = vpop.f32.mrf.mxu0
        %v738 = vadd.f32 0.0, %v737
        %v739 = vpop.f32.mrf.mxu0
        %v740 = vadd.f32 0.0, %v739
        %741 = vmatmul.bf16.gmra.mxu0 %v432
        %v742 = vpop.f32.mrf.mxu0
        %v743 = vadd.f32 0.0, %v742
        %v744 = vpop.f32.mrf.mxu0
        %v745 = vadd.f32 0.0, %v744
        %746 = vmatmul.bf16.gmra.mxu0 %v433
        %v747 = vpop.f32.mrf.mxu0
        %v748 = vadd.f32 0.0, %v747
        %v749 = vpop.f32.mrf.mxu0
        %v750 = vadd.f32 0.0, %v749
        %751 = vmatmul.bf16.gmra.mxu0 %v434
        %v752 = vpop.f32.mrf.mxu0
        %v753 = vadd.f32 0.0, %v752
        %v754 = vpop.f32.mrf.mxu0
        %v755 = vadd.f32 0.0, %v754
        %756 = vmatmul.bf16.gmra.mxu0 %v435
        %v757 = vpop.f32.mrf.mxu0
        %v758 = vadd.f32 0.0, %v757
        %v759 = vpop.f32.mrf.mxu0
        %v760 = vadd.f32 0.0, %v759
        %761 = vmatmul.bf16.gmra.mxu0 %v436
        %v762 = vpop.f32.mrf.mxu0
        %v763 = vadd.f32 0.0, %v762
        %v764 = vpop.f32.mrf.mxu0
        %v765 = vadd.f32 0.0, %v764
        %766 = vmatmul.bf16.gmra.mxu0 %v437
        %v767 = vpop.f32.mrf.mxu0
        %v768 = vadd.f32 0.0, %v767
        %v769 = vpop.f32.mrf.mxu0
        %v770 = vadd.f32 0.0, %v769
        %771 = vmatmul.bf16.gmra.mxu0 %v438
        %v772 = vpop.f32.mrf.mxu0
        %v773 = vadd.f32 0.0, %v772
        %v774 = vpop.f32.mrf.mxu0
        %v775 = vadd.f32 0.0, %v774
        %776 = vmatmul.bf16.gmra.mxu0 %v439
        %v777 = vpop.f32.mrf.mxu0
        %v778 = vadd.f32 0.0, %v777
        %v779 = vpop.f32.mrf.mxu0
        %v780 = vadd.f32 0.0, %v779
        %781 = vmatmul.bf16.gmra.mxu0 %v440
        %v782 = vpop.f32.mrf.mxu0
        %v783 = vadd.f32 0.0, %v782
        %v784 = vpop.f32.mrf.mxu0
        %v785 = vadd.f32 0.0, %v784
        %786 = vmatmul.bf16.gmra.mxu0 %v441
        %v787 = vpop.f32.mrf.mxu0
        %v788 = vadd.f32 0.0, %v787
        %v789 = vpop.f32.mrf.mxu0
        %v790 = vadd.f32 0.0, %v789
        %791 = vmatmul.bf16.gmra.mxu0 %v442
        %v792 = vpop.f32.mrf.mxu0
        %v793 = vadd.f32 0.0, %v792
        %v794 = vpop.f32.mrf.mxu0
        %v795 = vadd.f32 0.0, %v794
        %796 = vmatmul.bf16.gmra.mxu0 %v443
        %v797 = vpop.f32.mrf.mxu0
        %v798 = vadd.f32 0.0, %v797
        %v799 = vpop.f32.mrf.mxu0
        %v800 = vadd.f32 0.0, %v799
        %801 = vmatmul.bf16.gmra.mxu0 %v444
        %v802 = vpop.f32.mrf.mxu0
        %v803 = vadd.f32 0.0, %v802
        %v804 = vpop.f32.mrf.mxu0
        %v805 = vadd.f32 0.0, %v804
        %806 = vmatmul.bf16.gmra.mxu0 %v445
        %v807 = vpop.f32.mrf.mxu0
        %v808 = vadd.f32 0.0, %v807
        %v809 = vpop.f32.mrf.mxu0
        %v810 = vadd.f32 0.0, %v809
        %811 = vmatmul.bf16.gmra.mxu0 %v446
        %v812 = vpop.f32.mrf.mxu0
        %v813 = vadd.f32 0.0, %v812
        %v814 = vpop.f32.mrf.mxu0
        %v815 = vadd.f32 0.0, %v814
        %816 = vmatmul.bf16.gmra.mxu0 %v447
        %v817 = vpop.f32.mrf.mxu0
        %v818 = vadd.f32 0.0, %v817
        %v819 = vpop.f32.mrf.mxu0
        %v820 = vadd.f32 0.0, %v819
        %821 = vmatmul.bf16.gmra.mxu0 %v448
        %v822 = vpop.f32.mrf.mxu0
        %v823 = vadd.f32 0.0, %v822
        %v824 = vpop.f32.mrf.mxu0
        %v825 = vadd.f32 0.0, %v824
        %826 = vmatmul.bf16.gmra.mxu0 %v449
        %v827 = vpop.f32.mrf.mxu0
        %v828 = vadd.f32 0.0, %v827
        %v829 = vpop.f32.mrf.mxu0
        %v830 = vadd.f32 0.0, %v829
        %831 = vmatmul.bf16.gmra.mxu0 %v450
        %v832 = vpop.f32.mrf.mxu0
        %v833 = vadd.f32 0.0, %v832
        %v834 = vpop.f32.mrf.mxu0
        %v835 = vadd.f32 0.0, %v834
        %836 = vmatmul.bf16.gmra.mxu0 %v451
        %v837 = vpop.f32.mrf.mxu0
        %v838 = vadd.f32 0.0, %v837
        %v839 = vpop.f32.mrf.mxu0
        %v840 = vadd.f32 0.0, %v839
        %841 = vmatmul.bf16.gmra.mxu0 %v452
        %v842 = vpop.f32.mrf.mxu0
        %v843 = vadd.f32 0.0, %v842
        %v844 = vpop.f32.mrf.mxu0
        %v845 = vadd.f32 0.0, %v844
        %846 = vdwg.mxu0
        %847 = vmatpush.bf16.msra.mxu0 %v580
        %848 = vmatpush.bf16.msra.mxu0 %v577
        %849 = vmatpush.bf16.msra.mxu0 %v574
        %850 = vmatpush.bf16.msra.mxu0 %v571
        %851 = vmatpush.bf16.msra.mxu0 %v568
        %852 = vmatpush.bf16.msra.mxu0 %v565
        %853 = vmatpush.bf16.msra.mxu0 %v562
        %854 = vmatpush.bf16.msra.mxu0 %v559
        %855 = vmatmul.bf16.gmra.mxu0 %v429
        %v856 = vpop.f32.mrf.mxu0
        %v857 = vadd.f32 0.0, %v856
        %v858 = vpop.f32.mrf.mxu0
        %v859 = vadd.f32 0.0, %v858
        %860 = vmatmul.bf16.gmra.mxu0 %v430
        %v861 = vpop.f32.mrf.mxu0
        %v862 = vadd.f32 0.0, %v861
        %v863 = vpop.f32.mrf.mxu0
        %v864 = vadd.f32 0.0, %v863
        %865 = vmatmul.bf16.gmra.mxu0 %v431
        %v866 = vpop.f32.mrf.mxu0
        %v867 = vadd.f32 0.0, %v866
        %v868 = vpop.f32.mrf.mxu0
        %v869 = vadd.f32 0.0, %v868
        %870 = vmatmul.bf16.gmra.mxu0 %v432
        %v871 = vpop.f32.mrf.mxu0
        %v872 = vadd.f32 0.0, %v871
        %v873 = vpop.f32.mrf.mxu0
        %v874 = vadd.f32 0.0, %v873
        %875 = vmatmul.bf16.gmra.mxu0 %v433
        %v876 = vpop.f32.mrf.mxu0
        %v877 = vadd.f32 0.0, %v876
        %v878 = vpop.f32.mrf.mxu0
        %v879 = vadd.f32 0.0, %v878
        %880 = vmatmul.bf16.gmra.mxu0 %v434
        %v881 = vpop.f32.mrf.mxu0
        %v882 = vadd.f32 0.0, %v881
        %v883 = vpop.f32.mrf.mxu0
        %v884 = vadd.f32 0.0, %v883
        %885 = vmatmul.bf16.gmra.mxu0 %v435
        %v886 = vpop.f32.mrf.mxu0
        %v887 = vadd.f32 0.0, %v886
        %v888 = vpop.f32.mrf.mxu0
        %v889 = vadd.f32 0.0, %v888
        %890 = vmatmul.bf16.gmra.mxu0 %v436
        %v891 = vpop.f32.mrf.mxu0
        %v892 = vadd.f32 0.0, %v891
        %v893 = vpop.f32.mrf.mxu0
        %v894 = vadd.f32 0.0, %v893
        %895 = vmatmul.bf16.gmra.mxu0 %v437
        %v896 = vpop.f32.mrf.mxu0
        %v897 = vadd.f32 0.0, %v896
        %v898 = vpop.f32.mrf.mxu0
        %v899 = vadd.f32 0.0, %v898
        %900 = vmatmul.bf16.gmra.mxu0 %v438
        %v901 = vpop.f32.mrf.mxu0
        %v902 = vadd.f32 0.0, %v901
        %v903 = vpop.f32.mrf.mxu0
        %v904 = vadd.f32 0.0, %v903
        %905 = vmatmul.bf16.gmra.mxu0 %v439
        %v906 = vpop.f32.mrf.mxu0
        %v907 = vadd.f32 0.0, %v906
        %v908 = vpop.f32.mrf.mxu0
        %v909 = vadd.f32 0.0, %v908
        %910 = vmatmul.bf16.gmra.mxu0 %v440
        %v911 = vpop.f32.mrf.mxu0
        %v912 = vadd.f32 0.0, %v911
        %v913 = vpop.f32.mrf.mxu0
        %v914 = vadd.f32 0.0, %v913
        %915 = vmatmul.bf16.gmra.mxu0 %v441
        %v916 = vpop.f32.mrf.mxu0
        %v917 = vadd.f32 0.0, %v916
        %v918 = vpop.f32.mrf.mxu0
        %v919 = vadd.f32 0.0, %v918
        %920 = vmatmul.bf16.gmra.mxu0 %v442
        %v921 = vpop.f32.mrf.mxu0
        %v922 = vadd.f32 0.0, %v921
        %v923 = vpop.f32.mrf.mxu0
        %v924 = vadd.f32 0.0, %v923
        %925 = vmatmul.bf16.gmra.mxu0 %v443
        %v926 = vpop.f32.mrf.mxu0
        %v927 = vadd.f32 0.0, %v926
        %v928 = vpop.f32.mrf.mxu0
        %v929 = vadd.f32 0.0, %v928
        %930 = vmatmul.bf16.gmra.mxu0 %v444
        %v931 = vpop.f32.mrf.mxu0
        %v932 = vadd.f32 0.0, %v931
        %v933 = vpop.f32.mrf.mxu0
        %v934 = vadd.f32 0.0, %v933
        %935 = vmatmul.bf16.gmra.mxu0 %v445
        %v936 = vpop.f32.mrf.mxu0
        %v937 = vadd.f32 0.0, %v936
        %v938 = vpop.f32.mrf.mxu0
        %v939 = vadd.f32 0.0, %v938
        %940 = vmatmul.bf16.gmra.mxu0 %v446
        %v941 = vpop.f32.mrf.mxu0
        %v942 = vadd.f32 0.0, %v941
        %v943 = vpop.f32.mrf.mxu0
        %v944 = vadd.f32 0.0, %v943
        %945 = vmatmul.bf16.gmra.mxu0 %v447
        %v946 = vpop.f32.mrf.mxu0
        %v947 = vadd.f32 0.0, %v946
        %v948 = vpop.f32.mrf.mxu0
        %v949 = vadd.f32 0.0, %v948
        %950 = vmatmul.bf16.gmra.mxu0 %v448
        %v951 = vpop.f32.mrf.mxu0
        %v952 = vadd.f32 0.0, %v951
        %v953 = vpop.f32.mrf.mxu0
        %v954 = vadd.f32 0.0, %v953
        %955 = vmatmul.bf16.gmra.mxu0 %v449
        %v956 = vpop.f32.mrf.mxu0
        %v957 = vadd.f32 0.0, %v956
        %v958 = vpop.f32.mrf.mxu0
        %v959 = vadd.f32 0.0, %v958
        %960 = vmatmul.bf16.gmra.mxu0 %v450
        %v961 = vpop.f32.mrf.mxu0
        %v962 = vadd.f32 0.0, %v961
        %v963 = vpop.f32.mrf.mxu0
        %v964 = vadd.f32 0.0, %v963
        %965 = vmatmul.bf16.gmra.mxu0 %v451
        %v966 = vpop.f32.mrf.mxu0
        %v967 = vadd.f32 0.0, %v966
        %v968 = vpop.f32.mrf.mxu0
        %v969 = vadd.f32 0.0, %v968
        %970 = vmatmul.bf16.gmra.mxu0 %v452
        %v971 = vpop.f32.mrf.mxu0
        %v972 = vadd.f32 0.0, %v971
        %v973 = vpop.f32.mrf.mxu0
        %v974 = vadd.f32 0.0, %v973
        %975 = vdwg.mxu0
        %v979 = vunpack.c.l.b16 %v214
        %v980 = vunpack.c.l.b16 %v215
        %v981 = vunpack.c.l.b16 %v216
        %v982 = vpack.c.b16 %v980, %v979
        %v983 = vpack.c.b16 %v381, %v981
        %v984 = vpack.c.b16 %v383, %v382
        %v985 = vpack.c.b16 %v385, %v384
        %v986 = vpack.c.b16 %v387, %v386
        %v987 = vpack.c.b16 %v389, %v388
        %v988 = vpack.c.b16 %v391, %v390
        %v989 = vpack.c.b16 %v393, %v392
        %v990 = vpack.c.b16 %v395, %v394
        %v991 = vpack.c.b16 %v397, %v396
        %v992 = vpack.c.b16 %v399, %v398
        %v993 = vpack.c.b16 %v401, %v400
        %v994 = vpack.c.b16 %v403, %v402
        %v995 = vpack.c.b16 %v405, %v404
        %v996 = vpack.c.b16 %v407, %v406
        %v997 = vpack.c.b16 %v409, %v408
        %v998 = vpack.c.b16 %v411, %v410
        %v999 = vpack.c.b16 %v413, %v412
        %v1000 = vpack.c.b16 %v415, %v414
        %v1001 = vpack.c.b16 %v417, %v416
        %v1002 = vpack.c.b16 %v419, %v418
        %v1003 = vpack.c.b16 %v421, %v420
        %v1004 = vpack.c.b16 %v423, %v422
        %v1005 = vpack.c.b16 %v425, %v424
        %v1062 = vunpack.c.l.b16 %v268
        %v1063 = vunpack.c.h.b16 %v268
        %v1064 = vunpack.c.l.b16 %v269
        %v1065 = vunpack.c.l.b16 %v270
        %v1066 = vunpack.c.h.b16 %v270
        %v1067 = vunpack.c.l.b16 %v271
        %v1068 = vunpack.c.l.b16 %v272
        %v1069 = vunpack.c.h.b16 %v272
        %v1070 = vunpack.c.l.b16 %v273
        %v1071 = vunpack.c.l.b16 %v274
        %v1072 = vunpack.c.h.b16 %v274
        %v1073 = vunpack.c.l.b16 %v275
        %v1074 = vunpack.c.l.b16 %v276
        %v1075 = vunpack.c.h.b16 %v276
        %v1076 = vunpack.c.l.b16 %v277
        %v1077 = vunpack.c.l.b16 %v278
        %v1078 = vunpack.c.h.b16 %v278
        %v1079 = vunpack.c.l.b16 %v279
        %v1080 = vunpack.c.l.b16 %v280
        %v1081 = vunpack.c.h.b16 %v280
        %v1082 = vunpack.c.l.b16 %v281
        %v1083 = vunpack.c.l.b16 %v282
        %v1084 = vunpack.c.h.b16 %v282
        %v1085 = vunpack.c.l.b16 %v283
        %v1086 = vunpack.c.l.b16 %v284
        %v1087 = vunpack.c.h.b16 %v284
        %v1088 = vunpack.c.l.b16 %v285
        %v1089 = vunpack.c.l.b16 %v286
        %v1090 = vunpack.c.h.b16 %v286
        %v1091 = vunpack.c.l.b16 %v287
        %v1092 = vunpack.c.l.b16 %v288
        %v1093 = vunpack.c.h.b16 %v288
        %v1094 = vunpack.c.l.b16 %v289
        %v1095 = vunpack.c.l.b16 %v290
        %v1096 = vunpack.c.h.b16 %v290
        %v1097 = vunpack.c.l.b16 %v291
        %v1098 = vunpack.c.l.b16 %v292
        %v1099 = vunpack.c.h.b16 %v292
        %v1100 = vunpack.c.l.b16 %v293
        %v1101 = vunpack.c.l.b16 %v294
        %v1102 = vunpack.c.h.b16 %v294
        %v1103 = vunpack.c.l.b16 %v295
        %v1104 = vunpack.c.l.b16 %v296
        %v1105 = vunpack.c.h.b16 %v296
        %v1106 = vunpack.c.l.b16 %v297
        %v1107 = vunpack.c.l.b16 %v298
        %v1108 = vunpack.c.h.b16 %v298
        %v1109 = vunpack.c.l.b16 %v299
        %v1110 = vpack.c.b16 %v1065, %v1062
        %v1111 = vpack.c.b16 %v1066, %v1063
        %v1112 = vpack.c.b16 %v1067, %v1064
        %v1113 = vpack.c.b16 %v1071, %v1068
        %v1114 = vpack.c.b16 %v1072, %v1069
        %v1115 = vpack.c.b16 %v1073, %v1070
        %v1116 = vpack.c.b16 %v1077, %v1074
        %v1117 = vpack.c.b16 %v1078, %v1075
        %v1118 = vpack.c.b16 %v1079, %v1076
        %v1119 = vpack.c.b16 %v1083, %v1080
        %v1120 = vpack.c.b16 %v1084, %v1081
        %v1121 = vpack.c.b16 %v1085, %v1082
        %v1122 = vpack.c.b16 %v1089, %v1086
        %v1123 = vpack.c.b16 %v1090, %v1087
        %v1124 = vpack.c.b16 %v1091, %v1088
        %v1125 = vpack.c.b16 %v1095, %v1092
        %v1126 = vpack.c.b16 %v1096, %v1093
        %v1127 = vpack.c.b16 %v1097, %v1094
        %v1128 = vpack.c.b16 %v1101, %v1098
        %v1129 = vpack.c.b16 %v1102, %v1099
        %v1130 = vpack.c.b16 %v1103, %v1100
        %v1131 = vpack.c.b16 %v1107, %v1104
        %v1132 = vpack.c.b16 %v1108, %v1105
        %v1133 = vpack.c.b16 %v1109, %v1106
        %1158 = vmatpush.bf16.msra.mxu0 %v1131
        %1159 = vmatpush.bf16.msra.mxu0 %v1128
        %1160 = vmatpush.bf16.msra.mxu0 %v1125
        %1161 = vmatpush.bf16.msra.mxu0 %v1122
        %1162 = vmatpush.bf16.msra.mxu0 %v1119
        %1163 = vmatpush.bf16.msra.mxu0 %v1116
        %1164 = vmatpush.bf16.msra.mxu0 %v1113
        %1165 = vmatpush.bf16.msra.mxu0 %v1110
        %1166 = vmatmul.bf16.gmra.mxu0 %v982
        %v1167 = vpop.f32.mrf.mxu0
        %v1168 = vadd.f32 %v615, %v1167
        %v1169 = vpop.f32.mrf.mxu0
        %v1170 = vadd.f32 %v617, %v1169
        %1171 = vmatmul.bf16.gmra.mxu0 %v983
        %v1172 = vpop.f32.mrf.mxu0
        %v1173 = vpop.f32.mrf.mxu0
        %v1174 = vadd.f32 %v621, %v1173
        %1175 = vmatmul.bf16.gmra.mxu0 %v984
        %v1176 = vpop.f32.mrf.mxu0
        %v1177 = vadd.f32 %v624, %v1176
        %v1178 = vpop.f32.mrf.mxu0
        %1179 = vmatmul.bf16.gmra.mxu0 %v985
        %v1180 = vpop.f32.mrf.mxu0
        %v1181 = vadd.f32 %v628, %v1180
        %v1182 = vpop.f32.mrf.mxu0
        %v1183 = vadd.f32 %v630, %v1182
        %1184 = vmatmul.bf16.gmra.mxu0 %v986
        %v1185 = vpop.f32.mrf.mxu0
        %v1186 = vpop.f32.mrf.mxu0
        %v1187 = vadd.f32 %v634, %v1186
        %1188 = vmatmul.bf16.gmra.mxu0 %v987
        %v1189 = vpop.f32.mrf.mxu0
        %v1190 = vadd.f32 %v637, %v1189
        %v1191 = vpop.f32.mrf.mxu0
        %1192 = vmatmul.bf16.gmra.mxu0 %v988
        %v1193 = vpop.f32.mrf.mxu0
        %v1194 = vadd.f32 %v641, %v1193
        %v1195 = vpop.f32.mrf.mxu0
        %v1196 = vadd.f32 %v643, %v1195
        %1197 = vmatmul.bf16.gmra.mxu0 %v989
        %v1198 = vpop.f32.mrf.mxu0
        %v1199 = vpop.f32.mrf.mxu0
        %v1200 = vadd.f32 %v647, %v1199
        %1201 = vmatmul.bf16.gmra.mxu0 %v990
        %v1202 = vpop.f32.mrf.mxu0
        %v1203 = vadd.f32 %v650, %v1202
        %v1204 = vpop.f32.mrf.mxu0
        %1205 = vmatmul.bf16.gmra.mxu0 %v991
        %v1206 = vpop.f32.mrf.mxu0
        %v1207 = vadd.f32 %v654, %v1206
        %v1208 = vpop.f32.mrf.mxu0
        %v1209 = vadd.f32 %v656, %v1208
        %1210 = vmatmul.bf16.gmra.mxu0 %v992
        %v1211 = vpop.f32.mrf.mxu0
        %v1212 = vpop.f32.mrf.mxu0
        %v1213 = vadd.f32 %v660, %v1212
        %1214 = vmatmul.bf16.gmra.mxu0 %v993
        %v1215 = vpop.f32.mrf.mxu0
        %v1216 = vadd.f32 %v663, %v1215
        %v1217 = vpop.f32.mrf.mxu0
        %1218 = vmatmul.bf16.gmra.mxu0 %v994
        %v1219 = vpop.f32.mrf.mxu0
        %v1220 = vadd.f32 %v667, %v1219
        %v1221 = vpop.f32.mrf.mxu0
        %v1222 = vadd.f32 %v669, %v1221
        %1223 = vmatmul.bf16.gmra.mxu0 %v995
        %v1224 = vpop.f32.mrf.mxu0
        %v1225 = vpop.f32.mrf.mxu0
        %v1226 = vadd.f32 %v673, %v1225
        %1227 = vmatmul.bf16.gmra.mxu0 %v996
        %v1228 = vpop.f32.mrf.mxu0
        %v1229 = vadd.f32 %v676, %v1228
        %v1230 = vpop.f32.mrf.mxu0
        %1231 = vmatmul.bf16.gmra.mxu0 %v997
        %v1232 = vpop.f32.mrf.mxu0
        %v1233 = vadd.f32 %v680, %v1232
        %v1234 = vpop.f32.mrf.mxu0
        %v1235 = vadd.f32 %v682, %v1234
        %1236 = vmatmul.bf16.gmra.mxu0 %v998
        %v1237 = vpop.f32.mrf.mxu0
        %v1238 = vpop.f32.mrf.mxu0
        %v1239 = vadd.f32 %v686, %v1238
        %1240 = vmatmul.bf16.gmra.mxu0 %v999
        %v1241 = vpop.f32.mrf.mxu0
        %v1242 = vadd.f32 %v689, %v1241
        %v1243 = vpop.f32.mrf.mxu0
        %1244 = vmatmul.bf16.gmra.mxu0 %v1000
        %v1245 = vpop.f32.mrf.mxu0
        %v1246 = vadd.f32 %v693, %v1245
        %v1247 = vpop.f32.mrf.mxu0
        %v1248 = vadd.f32 %v695, %v1247
        %1249 = vmatmul.bf16.gmra.mxu0 %v1001
        %v1250 = vpop.f32.mrf.mxu0
        %v1251 = vpop.f32.mrf.mxu0
        %v1252 = vadd.f32 %v699, %v1251
        %1253 = vmatmul.bf16.gmra.mxu0 %v1002
        %v1254 = vpop.f32.mrf.mxu0
        %v1255 = vadd.f32 %v702, %v1254
        %v1256 = vpop.f32.mrf.mxu0
        %1257 = vmatmul.bf16.gmra.mxu0 %v1003
        %v1258 = vpop.f32.mrf.mxu0
        %v1259 = vadd.f32 %v706, %v1258
        %v1260 = vpop.f32.mrf.mxu0
        %v1261 = vadd.f32 %v708, %v1260
        %1262 = vmatmul.bf16.gmra.mxu0 %v1004
        %v1263 = vpop.f32.mrf.mxu0
        %v1264 = vpop.f32.mrf.mxu0
        %v1265 = vadd.f32 %v712, %v1264
        %1266 = vmatmul.bf16.gmra.mxu0 %v1005
        %v1267 = vpop.f32.mrf.mxu0
        %v1268 = vadd.f32 %v715, %v1267
        %v1269 = vpop.f32.mrf.mxu0
        %1270 = vdwg.mxu0
        %1271 = vmatpush.bf16.msra.mxu0 %v1132
        %1272 = vmatpush.bf16.msra.mxu0 %v1129
        %1273 = vmatpush.bf16.msra.mxu0 %v1126
        %1274 = vmatpush.bf16.msra.mxu0 %v1123
        %1275 = vmatpush.bf16.msra.mxu0 %v1120
        %1276 = vmatpush.bf16.msra.mxu0 %v1117
        %1277 = vmatpush.bf16.msra.mxu0 %v1114
        %1278 = vmatpush.bf16.msra.mxu0 %v1111
        %1279 = vmatmul.bf16.gmra.mxu0 %v982
        %v1280 = vpop.f32.mrf.mxu0
        %v1281 = vadd.f32 %v728, %v1280
        %v1282 = vpop.f32.mrf.mxu0
        %v1283 = vadd.f32 %v730, %v1282
        %1284 = vmatmul.bf16.gmra.mxu0 %v983
        %v1285 = vpop.f32.mrf.mxu0
        %v1286 = vadd.f32 %v733, %v1285
        %v1287 = vpop.f32.mrf.mxu0
        %v1288 = vadd.f32 %v735, %v1287
        %1289 = vmatmul.bf16.gmra.mxu0 %v984
        %v1290 = vpop.f32.mrf.mxu0
        %v1291 = vadd.f32 %v738, %v1290
        %v1292 = vpop.f32.mrf.mxu0
        %v1293 = vadd.f32 %v740, %v1292
        %1294 = vmatmul.bf16.gmra.mxu0 %v985
        %v1295 = vpop.f32.mrf.mxu0
        %v1296 = vadd.f32 %v743, %v1295
        %v1297 = vpop.f32.mrf.mxu0
        %v1298 = vadd.f32 %v745, %v1297
        %1299 = vmatmul.bf16.gmra.mxu0 %v986
        %v1300 = vpop.f32.mrf.mxu0
        %v1301 = vadd.f32 %v748, %v1300
        %v1302 = vpop.f32.mrf.mxu0
        %v1303 = vadd.f32 %v750, %v1302
        %1304 = vmatmul.bf16.gmra.mxu0 %v987
        %v1305 = vpop.f32.mrf.mxu0
        %v1306 = vadd.f32 %v753, %v1305
        %v1307 = vpop.f32.mrf.mxu0
        %v1308 = vadd.f32 %v755, %v1307
        %1309 = vmatmul.bf16.gmra.mxu0 %v988
        %v1310 = vpop.f32.mrf.mxu0
        %v1311 = vadd.f32 %v758, %v1310
        %v1312 = vpop.f32.mrf.mxu0
        %v1313 = vadd.f32 %v760, %v1312
        %1314 = vmatmul.bf16.gmra.mxu0 %v989
        %v1315 = vpop.f32.mrf.mxu0
        %v1316 = vadd.f32 %v763, %v1315
        %v1317 = vpop.f32.mrf.mxu0
        %v1318 = vadd.f32 %v765, %v1317
        %1319 = vmatmul.bf16.gmra.mxu0 %v990
        %v1320 = vpop.f32.mrf.mxu0
        %v1321 = vadd.f32 %v768, %v1320
        %v1322 = vpop.f32.mrf.mxu0
        %v1323 = vadd.f32 %v770, %v1322
        %1324 = vmatmul.bf16.gmra.mxu0 %v991
        %v1325 = vpop.f32.mrf.mxu0
        %v1326 = vadd.f32 %v773, %v1325
        %v1327 = vpop.f32.mrf.mxu0
        %v1328 = vadd.f32 %v775, %v1327
        %1329 = vmatmul.bf16.gmra.mxu0 %v992
        %v1330 = vpop.f32.mrf.mxu0
        %v1331 = vadd.f32 %v778, %v1330
        %v1332 = vpop.f32.mrf.mxu0
        %v1333 = vadd.f32 %v780, %v1332
        %1334 = vmatmul.bf16.gmra.mxu0 %v993
        %v1335 = vpop.f32.mrf.mxu0
        %v1336 = vadd.f32 %v783, %v1335
        %v1337 = vpop.f32.mrf.mxu0
        %v1338 = vadd.f32 %v785, %v1337
        %1339 = vmatmul.bf16.gmra.mxu0 %v994
        %v1340 = vpop.f32.mrf.mxu0
        %v1341 = vadd.f32 %v788, %v1340
        %v1342 = vpop.f32.mrf.mxu0
        %v1343 = vadd.f32 %v790, %v1342
        %1344 = vmatmul.bf16.gmra.mxu0 %v995
        %v1345 = vpop.f32.mrf.mxu0
        %v1346 = vadd.f32 %v793, %v1345
        %v1347 = vpop.f32.mrf.mxu0
        %v1348 = vadd.f32 %v795, %v1347
        %1349 = vmatmul.bf16.gmra.mxu0 %v996
        %v1350 = vpop.f32.mrf.mxu0
        %v1351 = vadd.f32 %v798, %v1350
        %v1352 = vpop.f32.mrf.mxu0
        %v1353 = vadd.f32 %v800, %v1352
        %1354 = vmatmul.bf16.gmra.mxu0 %v997
        %v1355 = vpop.f32.mrf.mxu0
        %v1356 = vadd.f32 %v803, %v1355
        %v1357 = vpop.f32.mrf.mxu0
        %v1358 = vadd.f32 %v805, %v1357
        %1359 = vmatmul.bf16.gmra.mxu0 %v998
        %v1360 = vpop.f32.mrf.mxu0
        %v1361 = vadd.f32 %v808, %v1360
        %v1362 = vpop.f32.mrf.mxu0
        %v1363 = vadd.f32 %v810, %v1362
        %1364 = vmatmul.bf16.gmra.mxu0 %v999
        %v1365 = vpop.f32.mrf.mxu0
        %v1366 = vadd.f32 %v813, %v1365
        %v1367 = vpop.f32.mrf.mxu0
        %v1368 = vadd.f32 %v815, %v1367
        %1369 = vmatmul.bf16.gmra.mxu0 %v1000
        %v1370 = vpop.f32.mrf.mxu0
        %v1371 = vadd.f32 %v818, %v1370
        %v1372 = vpop.f32.mrf.mxu0
        %v1373 = vadd.f32 %v820, %v1372
        %1374 = vmatmul.bf16.gmra.mxu0 %v1001
        %v1375 = vpop.f32.mrf.mxu0
        %v1376 = vadd.f32 %v823, %v1375
        %v1377 = vpop.f32.mrf.mxu0
        %v1378 = vadd.f32 %v825, %v1377
        %1379 = vmatmul.bf16.gmra.mxu0 %v1002
        %v1380 = vpop.f32.mrf.mxu0
        %v1381 = vadd.f32 %v828, %v1380
        %v1382 = vpop.f32.mrf.mxu0
        %v1383 = vadd.f32 %v830, %v1382
        %1384 = vmatmul.bf16.gmra.mxu0 %v1003
        %v1385 = vpop.f32.mrf.mxu0
        %v1386 = vadd.f32 %v833, %v1385
        %v1387 = vpop.f32.mrf.mxu0
        %v1388 = vadd.f32 %v835, %v1387
        %1389 = vmatmul.bf16.gmra.mxu0 %v1004
        %v1390 = vpop.f32.mrf.mxu0
        %v1391 = vadd.f32 %v838, %v1390
        %v1392 = vpop.f32.mrf.mxu0
        %v1393 = vadd.f32 %v840, %v1392
        %1394 = vmatmul.bf16.gmra.mxu0 %v1005
        %v1395 = vpop.f32.mrf.mxu0
        %v1396 = vadd.f32 %v843, %v1395
        %v1397 = vpop.f32.mrf.mxu0
        %v1398 = vadd.f32 %v845, %v1397
        %1399 = vdwg.mxu0
        %1400 = vmatpush.bf16.msra.mxu0 %v1133
        %1401 = vmatpush.bf16.msra.mxu0 %v1130
        %1402 = vmatpush.bf16.msra.mxu0 %v1127
        %1403 = vmatpush.bf16.msra.mxu0 %v1124
        %1404 = vmatpush.bf16.msra.mxu0 %v1121
        %1405 = vmatpush.bf16.msra.mxu0 %v1118
        %1406 = vmatpush.bf16.msra.mxu0 %v1115
        %1407 = vmatpush.bf16.msra.mxu0 %v1112
        %1408 = vmatmul.bf16.gmra.mxu0 %v982
        %v1409 = vpop.f32.mrf.mxu0
        %v1410 = vadd.f32 %v857, %v1409
        %v1411 = vpop.f32.mrf.mxu0
        %v1412 = vadd.f32 %v859, %v1411
        %1413 = vmatmul.bf16.gmra.mxu0 %v983
        %v1414 = vpop.f32.mrf.mxu0
        %v1415 = vadd.f32 %v862, %v1414
        %v1416 = vpop.f32.mrf.mxu0
        %v1417 = vadd.f32 %v864, %v1416
        %1418 = vmatmul.bf16.gmra.mxu0 %v984
        %v1419 = vpop.f32.mrf.mxu0
        %v1420 = vadd.f32 %v867, %v1419
        %v1421 = vpop.f32.mrf.mxu0
        %v1422 = vadd.f32 %v869, %v1421
        %1423 = vmatmul.bf16.gmra.mxu0 %v985
        %v1424 = vpop.f32.mrf.mxu0
        %v1425 = vadd.f32 %v872, %v1424
        %v1426 = vpop.f32.mrf.mxu0
        %v1427 = vadd.f32 %v874, %v1426
        %1428 = vmatmul.bf16.gmra.mxu0 %v986
        %v1429 = vpop.f32.mrf.mxu0
        %v1430 = vadd.f32 %v877, %v1429
        %v1431 = vpop.f32.mrf.mxu0
        %v1432 = vadd.f32 %v879, %v1431
        %1433 = vmatmul.bf16.gmra.mxu0 %v987
        %v1434 = vpop.f32.mrf.mxu0
        %v1435 = vadd.f32 %v882, %v1434
        %v1436 = vpop.f32.mrf.mxu0
        %v1437 = vadd.f32 %v884, %v1436
        %1438 = vmatmul.bf16.gmra.mxu0 %v988
        %v1439 = vpop.f32.mrf.mxu0
        %v1440 = vadd.f32 %v887, %v1439
        %v1441 = vpop.f32.mrf.mxu0
        %v1442 = vadd.f32 %v889, %v1441
        %1443 = vmatmul.bf16.gmra.mxu0 %v989
        %v1444 = vpop.f32.mrf.mxu0
        %v1445 = vadd.f32 %v892, %v1444
        %v1446 = vpop.f32.mrf.mxu0
        %v1447 = vadd.f32 %v894, %v1446
        %1448 = vmatmul.bf16.gmra.mxu0 %v990
        %v1449 = vpop.f32.mrf.mxu0
        %v1450 = vadd.f32 %v897, %v1449
        %v1451 = vpop.f32.mrf.mxu0
        %v1452 = vadd.f32 %v899, %v1451
        %1453 = vmatmul.bf16.gmra.mxu0 %v991
        %v1454 = vpop.f32.mrf.mxu0
        %v1455 = vadd.f32 %v902, %v1454
        %v1456 = vpop.f32.mrf.mxu0
        %v1457 = vadd.f32 %v904, %v1456
        %1458 = vmatmul.bf16.gmra.mxu0 %v992
        %v1459 = vpop.f32.mrf.mxu0
        %v1460 = vadd.f32 %v907, %v1459
        %v1461 = vpop.f32.mrf.mxu0
        %v1462 = vadd.f32 %v909, %v1461
        %1463 = vmatmul.bf16.gmra.mxu0 %v993
        %v1464 = vpop.f32.mrf.mxu0
        %v1465 = vadd.f32 %v912, %v1464
        %v1466 = vpop.f32.mrf.mxu0
        %v1467 = vadd.f32 %v914, %v1466
        %1468 = vmatmul.bf16.gmra.mxu0 %v994
        %v1469 = vpop.f32.mrf.mxu0
        %v1470 = vadd.f32 %v917, %v1469
        %v1471 = vpop.f32.mrf.mxu0
        %v1472 = vadd.f32 %v919, %v1471
        %1473 = vmatmul.bf16.gmra.mxu0 %v995
        %v1474 = vpop.f32.mrf.mxu0
        %v1475 = vadd.f32 %v922, %v1474
        %v1476 = vpop.f32.mrf.mxu0
        %v1477 = vadd.f32 %v924, %v1476
        %1478 = vmatmul.bf16.gmra.mxu0 %v996
        %v1479 = vpop.f32.mrf.mxu0
        %v1480 = vadd.f32 %v927, %v1479
        %v1481 = vpop.f32.mrf.mxu0
        %v1482 = vadd.f32 %v929, %v1481
        %1483 = vmatmul.bf16.gmra.mxu0 %v997
        %v1484 = vpop.f32.mrf.mxu0
        %v1485 = vadd.f32 %v932, %v1484
        %v1486 = vpop.f32.mrf.mxu0
        %v1487 = vadd.f32 %v934, %v1486
        %1488 = vmatmul.bf16.gmra.mxu0 %v998
        %v1489 = vpop.f32.mrf.mxu0
        %v1490 = vadd.f32 %v937, %v1489
        %v1491 = vpop.f32.mrf.mxu0
        %v1492 = vadd.f32 %v939, %v1491
        %1493 = vmatmul.bf16.gmra.mxu0 %v999
        %v1494 = vpop.f32.mrf.mxu0
        %v1495 = vadd.f32 %v942, %v1494
        %v1496 = vpop.f32.mrf.mxu0
        %v1497 = vadd.f32 %v944, %v1496
        %1498 = vmatmul.bf16.gmra.mxu0 %v1000
        %v1499 = vpop.f32.mrf.mxu0
        %v1500 = vadd.f32 %v947, %v1499
        %v1501 = vpop.f32.mrf.mxu0
        %v1502 = vadd.f32 %v949, %v1501
        %1503 = vmatmul.bf16.gmra.mxu0 %v1001
        %v1504 = vpop.f32.mrf.mxu0
        %v1505 = vadd.f32 %v952, %v1504
        %v1506 = vpop.f32.mrf.mxu0
        %v1507 = vadd.f32 %v954, %v1506
        %1508 = vmatmul.bf16.gmra.mxu0 %v1002
        %v1509 = vpop.f32.mrf.mxu0
        %v1510 = vadd.f32 %v957, %v1509
        %v1511 = vpop.f32.mrf.mxu0
        %v1512 = vadd.f32 %v959, %v1511
        %1513 = vmatmul.bf16.gmra.mxu0 %v1003
        %v1514 = vpop.f32.mrf.mxu0
        %v1515 = vadd.f32 %v962, %v1514
        %v1516 = vpop.f32.mrf.mxu0
        %v1517 = vadd.f32 %v964, %v1516
        %1518 = vmatmul.bf16.gmra.mxu0 %v1004
        %v1519 = vpop.f32.mrf.mxu0
        %v1520 = vadd.f32 %v967, %v1519
        %v1521 = vpop.f32.mrf.mxu0
        %v1522 = vadd.f32 %v969, %v1521
        %1523 = vmatmul.bf16.gmra.mxu0 %v1005
        %v1524 = vpop.f32.mrf.mxu0
        %v1525 = vadd.f32 %v972, %v1524
        %v1526 = vpop.f32.mrf.mxu0
        %v1527 = vadd.f32 %v974, %v1526
        %1528 = vdwg.mxu0
        %s1529 = scalar_lea.vmem [#allocation4], 384
        %v1530 = vld [vmem:[%s1529] sm:$0xff]
        %v1531 = vld [vmem:[%s1529 + $0x8] sm:$0xf]
        %v1532 = vld [vmem:[%s1529 + $0xc] sm:$0xff]
        %v1533 = vld [vmem:[%s1529 + $0x14] sm:$0xf]
        %v1534 = vld [vmem:[%s1529 + $0x18] sm:$0xff]
        %v1535 = vld [vmem:[%s1529 + $0x20] sm:$0xf]
        %v1536 = vld [vmem:[%s1529 + $0x24] sm:$0xff]
        %v1537 = vld [vmem:[%s1529 + $0x2c] sm:$0xf]
        %v1538 = vld [vmem:[%s1529 + $0x30] sm:$0xff]
        %v1539 = vld [vmem:[%s1529 + $0x38] sm:$0xf]
        %v1540 = vld [vmem:[%s1529 + $0x3c] sm:$0xff]
        %v1541 = vld [vmem:[%s1529 + $0x44] sm:$0xf]
        %v1542 = vld [vmem:[%s1529 + $0x48] sm:$0xff]
        %v1543 = vld [vmem:[%s1529 + $0x50] sm:$0xf]
        %v1544 = vld [vmem:[%s1529 + $0x54] sm:$0xff]
        %v1545 = vld [vmem:[%s1529 + $0x5c] sm:$0xf]
        %v1546 = vld [vmem:[%s1529 + $0x60] sm:$0xff]
        %v1547 = vld [vmem:[%s1529 + $0x68] sm:$0xf]
        %v1548 = vld [vmem:[%s1529 + $0x6c] sm:$0xff]
        %v1549 = vld [vmem:[%s1529 + $0x74] sm:$0xf]
        %v1550 = vld [vmem:[%s1529 + $0x78] sm:$0xff]
        %v1551 = vld [vmem:[%s1529 + $0x80] sm:$0xf]
        %v1552 = vld [vmem:[%s1529 + $0x84] sm:$0xff]
        %v1553 = vld [vmem:[%s1529 + $0x8c] sm:$0xf]
        %v1554 = vld [vmem:[%s1529 + $0x90] sm:$0xff]
        %v1555 = vld [vmem:[%s1529 + $0x98] sm:$0xf]
        %v1556 = vld [vmem:[%s1529 + $0x9c] sm:$0xff]
        %v1557 = vld [vmem:[%s1529 + $0xa4] sm:$0xf]
        %v1558 = vld [vmem:[%s1529 + $0xa8] sm:$0xff]
        %v1559 = vld [vmem:[%s1529 + $0xb0] sm:$0xf]
        %v1560 = vld [vmem:[%s1529 + $0xb4] sm:$0xff]
        %v1561 = vld [vmem:[%s1529 + $0xbc] sm:$0xf]
        %v1565 = vunpack.c.l.b16 %v265
        %v1566 = vunpack.c.l.b16 %v266
        %v1567 = vunpack.c.l.b16 %v267
        %v1568 = vpack.c.b16 %v427, %v426
        %v1569 = vpack.c.b16 %v1565, %v428
        %v1570 = vpack.c.b16 %v1567, %v1566
        %v1606 = vunpack.c.l.b16 %v1530
        %v1607 = vunpack.c.h.b16 %v1530
        %v1608 = vunpack.c.l.b16 %v1531
        %v1609 = vunpack.c.l.b16 %v1532
        %v1610 = vunpack.c.h.b16 %v1532
        %v1611 = vunpack.c.l.b16 %v1533
        %v1612 = vunpack.c.l.b16 %v1534
        %v1613 = vunpack.c.h.b16 %v1534
        %v1614 = vunpack.c.l.b16 %v1535
        %v1615 = vunpack.c.l.b16 %v1536
        %v1616 = vunpack.c.h.b16 %v1536
        %v1617 = vunpack.c.l.b16 %v1537
        %v1618 = vunpack.c.l.b16 %v1538
        %v1619 = vunpack.c.h.b16 %v1538
        %v1620 = vunpack.c.l.b16 %v1539
        %v1621 = vunpack.c.l.b16 %v1540
        %v1622 = vunpack.c.h.b16 %v1540
        %v1623 = vunpack.c.l.b16 %v1541
        %v1624 = vunpack.c.l.b16 %v1542
        %v1625 = vunpack.c.h.b16 %v1542
        %v1626 = vunpack.c.l.b16 %v1543
        %v1627 = vunpack.c.l.b16 %v1544
        %v1628 = vunpack.c.h.b16 %v1544
        %v1629 = vunpack.c.l.b16 %v1545
        %v1630 = vunpack.c.l.b16 %v1546
        %v1631 = vunpack.c.h.b16 %v1546
        %v1632 = vunpack.c.l.b16 %v1547
        %v1633 = vunpack.c.l.b16 %v1548
        %v1634 = vunpack.c.h.b16 %v1548
        %v1635 = vunpack.c.l.b16 %v1549
        %v1636 = vunpack.c.l.b16 %v1550
        %v1637 = vunpack.c.h.b16 %v1550
        %v1638 = vunpack.c.l.b16 %v1551
        %v1639 = vunpack.c.l.b16 %v1552
        %v1640 = vunpack.c.h.b16 %v1552
        %v1641 = vunpack.c.l.b16 %v1553
        %v1642 = vunpack.c.l.b16 %v1554
        %v1643 = vunpack.c.h.b16 %v1554
        %v1644 = vunpack.c.l.b16 %v1555
        %v1645 = vunpack.c.l.b16 %v1556
        %v1646 = vunpack.c.h.b16 %v1556
        %v1647 = vunpack.c.l.b16 %v1557
        %v1648 = vunpack.c.l.b16 %v1558
        %v1649 = vunpack.c.h.b16 %v1558
        %v1650 = vunpack.c.l.b16 %v1559
        %v1651 = vunpack.c.l.b16 %v1560
        %v1652 = vunpack.c.h.b16 %v1560
        %v1653 = vunpack.c.l.b16 %v1561
        %v1654 = vpack.c.b16 %v1609, %v1606
        %v1655 = vpack.c.b16 %v1610, %v1607
        %v1656 = vpack.c.b16 %v1611, %v1608
        %v1657 = vpack.c.b16 %v1615, %v1612
        %v1658 = vpack.c.b16 %v1616, %v1613
        %v1659 = vpack.c.b16 %v1617, %v1614
        %v1660 = vpack.c.b16 %v1621, %v1618
        %v1661 = vpack.c.b16 %v1622, %v1619
        %v1662 = vpack.c.b16 %v1623, %v1620
        %v1663 = vpack.c.b16 %v1627, %v1624
        %v1664 = vpack.c.b16 %v1628, %v1625
        %v1665 = vpack.c.b16 %v1629, %v1626
        %v1666 = vpack.c.b16 %v1633, %v1630
        %v1667 = vpack.c.b16 %v1634, %v1631
        %v1668 = vpack.c.b16 %v1635, %v1632
        %v1669 = vpack.c.b16 %v1639, %v1636
        %v1670 = vpack.c.b16 %v1640, %v1637
        %v1671 = vpack.c.b16 %v1641, %v1638
        %v1672 = vpack.c.b16 %v1645, %v1642
        %v1673 = vpack.c.b16 %v1646, %v1643
        %v1674 = vpack.c.b16 %v1647, %v1644
        %v1675 = vpack.c.b16 %v1651, %v1648
        %v1676 = vpack.c.b16 %v1652, %v1649
        %v1677 = vpack.c.b16 %v1653, %v1650
        %1702 = vmatpush.bf16.msra.mxu0 %v1675
        %1703 = vmatpush.bf16.msra.mxu0 %v1672
        %1704 = vmatpush.bf16.msra.mxu0 %v1669
        %1705 = vmatpush.bf16.msra.mxu0 %v1666
        %1706 = vmatpush.bf16.msra.mxu0 %v1663
        %1707 = vmatpush.bf16.msra.mxu0 %v1660
        %1708 = vmatpush.bf16.msra.mxu0 %v1657
        %1709 = vmatpush.bf16.msra.mxu0 %v1654
        %1710 = vmatmul.bf16.gmra.mxu0 %v985
        %v1711 = vpop.f32.mrf.mxu0
        %v1712 = vadd.f32 0.0, %v1711
        %v1713 = vpop.f32.mrf.mxu0
        %v1714 = vadd.f32 0.0, %v1713
        %1715 = vmatmul.bf16.gmra.mxu0 %v986
        %v1716 = vpop.f32.mrf.mxu0
        %v1717 = vpop.f32.mrf.mxu0
        %v1718 = vadd.f32 0.0, %v1717
        %1719 = vmatmul.bf16.gmra.mxu0 %v987
        %v1720 = vpop.f32.mrf.mxu0
        %v1721 = vadd.f32 0.0, %v1720
        %v1722 = vpop.f32.mrf.mxu0
        %1723 = vmatmul.bf16.gmra.mxu0 %v988
        %v1724 = vpop.f32.mrf.mxu0
        %v1725 = vadd.f32 0.0, %v1724
        %v1726 = vpop.f32.mrf.mxu0
        %v1727 = vadd.f32 0.0, %v1726
        %1728 = vmatmul.bf16.gmra.mxu0 %v989
        %v1729 = vpop.f32.mrf.mxu0
        %v1730 = vpop.f32.mrf.mxu0
        %v1731 = vadd.f32 0.0, %v1730
        %1732 = vmatmul.bf16.gmra.mxu0 %v990
        %v1733 = vpop.f32.mrf.mxu0
        %v1734 = vadd.f32 0.0, %v1733
        %v1735 = vpop.f32.mrf.mxu0
        %1736 = vmatmul.bf16.gmra.mxu0 %v991
        %v1737 = vpop.f32.mrf.mxu0
        %v1738 = vadd.f32 0.0, %v1737
        %v1739 = vpop.f32.mrf.mxu0
        %v1740 = vadd.f32 0.0, %v1739
        %1741 = vmatmul.bf16.gmra.mxu0 %v992
        %v1742 = vpop.f32.mrf.mxu0
        %v1743 = vpop.f32.mrf.mxu0
        %v1744 = vadd.f32 0.0, %v1743
        %1745 = vmatmul.bf16.gmra.mxu0 %v993
        %v1746 = vpop.f32.mrf.mxu0
        %v1747 = vadd.f32 0.0, %v1746
        %v1748 = vpop.f32.mrf.mxu0
        %1749 = vmatmul.bf16.gmra.mxu0 %v994
        %v1750 = vpop.f32.mrf.mxu0
        %v1751 = vadd.f32 0.0, %v1750
        %v1752 = vpop.f32.mrf.mxu0
        %v1753 = vadd.f32 0.0, %v1752
        %1754 = vmatmul.bf16.gmra.mxu0 %v995
        %v1755 = vpop.f32.mrf.mxu0
        %v1756 = vpop.f32.mrf.mxu0
        %v1757 = vadd.f32 0.0, %v1756
        %1758 = vmatmul.bf16.gmra.mxu0 %v996
        %v1759 = vpop.f32.mrf.mxu0
        %v1760 = vadd.f32 0.0, %v1759
        %v1761 = vpop.f32.mrf.mxu0
        %1762 = vmatmul.bf16.gmra.mxu0 %v997
        %v1763 = vpop.f32.mrf.mxu0
        %v1764 = vadd.f32 0.0, %v1763
        %v1765 = vpop.f32.mrf.mxu0
        %v1766 = vadd.f32 0.0, %v1765
        %1767 = vmatmul.bf16.gmra.mxu0 %v998
        %v1768 = vpop.f32.mrf.mxu0
        %v1769 = vpop.f32.mrf.mxu0
        %v1770 = vadd.f32 0.0, %v1769
        %1771 = vmatmul.bf16.gmra.mxu0 %v999
        %v1772 = vpop.f32.mrf.mxu0
        %v1773 = vadd.f32 0.0, %v1772
        %v1774 = vpop.f32.mrf.mxu0
        %1775 = vmatmul.bf16.gmra.mxu0 %v1000
        %v1776 = vpop.f32.mrf.mxu0
        %v1777 = vadd.f32 0.0, %v1776
        %v1778 = vpop.f32.mrf.mxu0
        %v1779 = vadd.f32 0.0, %v1778
        %1780 = vmatmul.bf16.gmra.mxu0 %v1001
        %v1781 = vpop.f32.mrf.mxu0
        %v1782 = vpop.f32.mrf.mxu0
        %v1783 = vadd.f32 0.0, %v1782
        %1784 = vmatmul.bf16.gmra.mxu0 %v1002
        %v1785 = vpop.f32.mrf.mxu0
        %v1786 = vadd.f32 0.0, %v1785
        %v1787 = vpop.f32.mrf.mxu0
        %1788 = vmatmul.bf16.gmra.mxu0 %v1003
        %v1789 = vpop.f32.mrf.mxu0
        %v1790 = vadd.f32 0.0, %v1789
        %v1791 = vpop.f32.mrf.mxu0
        %v1792 = vadd.f32 0.0, %v1791
        %1793 = vmatmul.bf16.gmra.mxu0 %v1004
        %v1794 = vpop.f32.mrf.mxu0
        %v1795 = vpop.f32.mrf.mxu0
        %v1796 = vadd.f32 0.0, %v1795
        %1797 = vmatmul.bf16.gmra.mxu0 %v1005
        %v1798 = vpop.f32.mrf.mxu0
        %v1799 = vadd.f32 0.0, %v1798
        %v1800 = vpop.f32.mrf.mxu0
        %1801 = vmatmul.bf16.gmra.mxu0 %v1568
        %v1802 = vpop.f32.mrf.mxu0
        %v1803 = vadd.f32 0.0, %v1802
        %v1804 = vpop.f32.mrf.mxu0
        %v1805 = vadd.f32 0.0, %v1804
        %1806 = vmatmul.bf16.gmra.mxu0 %v1569
        %v1807 = vpop.f32.mrf.mxu0
        %v1808 = vpop.f32.mrf.mxu0
        %v1809 = vadd.f32 0.0, %v1808
        %1810 = vmatmul.bf16.gmra.mxu0 %v1570
        %v1811 = vpop.f32.mrf.mxu0
        %v1812 = vadd.f32 0.0, %v1811
        %v1813 = vpop.f32.mrf.mxu0
        %1814 = vdwg.mxu0
        %1815 = vmatpush.bf16.msra.mxu0 %v1676
        %1816 = vmatpush.bf16.msra.mxu0 %v1673
        %1817 = vmatpush.bf16.msra.mxu0 %v1670
        %1818 = vmatpush.bf16.msra.mxu0 %v1667
        %1819 = vmatpush.bf16.msra.mxu0 %v1664
        %1820 = vmatpush.bf16.msra.mxu0 %v1661
        %1821 = vmatpush.bf16.msra.mxu0 %v1658
        %1822 = vmatpush.bf16.msra.mxu0 %v1655
        %1823 = vmatmul.bf16.gmra.mxu0 %v985
        %v1824 = vpop.f32.mrf.mxu0
        %v1825 = vadd.f32 0.0, %v1824
        %v1826 = vpop.f32.mrf.mxu0
        %v1827 = vadd.f32 0.0, %v1826
        %1828 = vmatmul.bf16.gmra.mxu0 %v986
        %v1829 = vpop.f32.mrf.mxu0
        %v1830 = vadd.f32 0.0, %v1829
        %v1831 = vpop.f32.mrf.mxu0
        %v1832 = vadd.f32 0.0, %v1831
        %1833 = vmatmul.bf16.gmra.mxu0 %v987
        %v1834 = vpop.f32.mrf.mxu0
        %v1835 = vadd.f32 0.0, %v1834
        %v1836 = vpop.f32.mrf.mxu0
        %v1837 = vadd.f32 0.0, %v1836
        %1838 = vmatmul.bf16.gmra.mxu0 %v988
        %v1839 = vpop.f32.mrf.mxu0
        %v1840 = vadd.f32 0.0, %v1839
        %v1841 = vpop.f32.mrf.mxu0
        %v1842 = vadd.f32 0.0, %v1841
        %1843 = vmatmul.bf16.gmra.mxu0 %v989
        %v1844 = vpop.f32.mrf.mxu0
        %v1845 = vadd.f32 0.0, %v1844
        %v1846 = vpop.f32.mrf.mxu0
        %v1847 = vadd.f32 0.0, %v1846
        %1848 = vmatmul.bf16.gmra.mxu0 %v990
        %v1849 = vpop.f32.mrf.mxu0
        %v1850 = vadd.f32 0.0, %v1849
        %v1851 = vpop.f32.mrf.mxu0
        %v1852 = vadd.f32 0.0, %v1851
        %1853 = vmatmul.bf16.gmra.mxu0 %v991
        %v1854 = vpop.f32.mrf.mxu0
        %v1855 = vadd.f32 0.0, %v1854
        %v1856 = vpop.f32.mrf.mxu0
        %v1857 = vadd.f32 0.0, %v1856
        %1858 = vmatmul.bf16.gmra.mxu0 %v992
        %v1859 = vpop.f32.mrf.mxu0
        %v1860 = vadd.f32 0.0, %v1859
        %v1861 = vpop.f32.mrf.mxu0
        %v1862 = vadd.f32 0.0, %v1861
        %1863 = vmatmul.bf16.gmra.mxu0 %v993
        %v1864 = vpop.f32.mrf.mxu0
        %v1865 = vadd.f32 0.0, %v1864
        %v1866 = vpop.f32.mrf.mxu0
        %v1867 = vadd.f32 0.0, %v1866
        %1868 = vmatmul.bf16.gmra.mxu0 %v994
        %v1869 = vpop.f32.mrf.mxu0
        %v1870 = vadd.f32 0.0, %v1869
        %v1871 = vpop.f32.mrf.mxu0
        %v1872 = vadd.f32 0.0, %v1871
        %1873 = vmatmul.bf16.gmra.mxu0 %v995
        %v1874 = vpop.f32.mrf.mxu0
        %v1875 = vadd.f32 0.0, %v1874
        %v1876 = vpop.f32.mrf.mxu0
        %v1877 = vadd.f32 0.0, %v1876
        %1878 = vmatmul.bf16.gmra.mxu0 %v996
        %v1879 = vpop.f32.mrf.mxu0
        %v1880 = vadd.f32 0.0, %v1879
        %v1881 = vpop.f32.mrf.mxu0
        %v1882 = vadd.f32 0.0, %v1881
        %1883 = vmatmul.bf16.gmra.mxu0 %v997
        %v1884 = vpop.f32.mrf.mxu0
        %v1885 = vadd.f32 0.0, %v1884
        %v1886 = vpop.f32.mrf.mxu0
        %v1887 = vadd.f32 0.0, %v1886
        %1888 = vmatmul.bf16.gmra.mxu0 %v998
        %v1889 = vpop.f32.mrf.mxu0
        %v1890 = vadd.f32 0.0, %v1889
        %v1891 = vpop.f32.mrf.mxu0
        %v1892 = vadd.f32 0.0, %v1891
        %1893 = vmatmul.bf16.gmra.mxu0 %v999
        %v1894 = vpop.f32.mrf.mxu0
        %v1895 = vadd.f32 0.0, %v1894
        %v1896 = vpop.f32.mrf.mxu0
        %v1897 = vadd.f32 0.0, %v1896
        %1898 = vmatmul.bf16.gmra.mxu0 %v1000
        %v1899 = vpop.f32.mrf.mxu0
        %v1900 = vadd.f32 0.0, %v1899
        %v1901 = vpop.f32.mrf.mxu0
        %v1902 = vadd.f32 0.0, %v1901
        %1903 = vmatmul.bf16.gmra.mxu0 %v1001
        %v1904 = vpop.f32.mrf.mxu0
        %v1905 = vadd.f32 0.0, %v1904
        %v1906 = vpop.f32.mrf.mxu0
        %v1907 = vadd.f32 0.0, %v1906
        %1908 = vmatmul.bf16.gmra.mxu0 %v1002
        %v1909 = vpop.f32.mrf.mxu0
        %v1910 = vadd.f32 0.0, %v1909
        %v1911 = vpop.f32.mrf.mxu0
        %v1912 = vadd.f32 0.0, %v1911
        %1913 = vmatmul.bf16.gmra.mxu0 %v1003
        %v1914 = vpop.f32.mrf.mxu0
        %v1915 = vadd.f32 0.0, %v1914
        %v1916 = vpop.f32.mrf.mxu0
        %v1917 = vadd.f32 0.0, %v1916
        %1918 = vmatmul.bf16.gmra.mxu0 %v1004
        %v1919 = vpop.f32.mrf.mxu0
        %v1920 = vadd.f32 0.0, %v1919
        %v1921 = vpop.f32.mrf.mxu0
        %v1922 = vadd.f32 0.0, %v1921
        %1923 = vmatmul.bf16.gmra.mxu0 %v1005
        %v1924 = vpop.f32.mrf.mxu0
        %v1925 = vadd.f32 0.0, %v1924
        %v1926 = vpop.f32.mrf.mxu0
        %v1927 = vadd.f32 0.0, %v1926
        %1928 = vmatmul.bf16.gmra.mxu0 %v1568
        %v1929 = vpop.f32.mrf.mxu0
        %v1930 = vadd.f32 0.0, %v1929
        %v1931 = vpop.f32.mrf.mxu0
        %v1932 = vadd.f32 0.0, %v1931
        %1933 = vmatmul.bf16.gmra.mxu0 %v1569
        %v1934 = vpop.f32.mrf.mxu0
        %v1935 = vadd.f32 0.0, %v1934
        %v1936 = vpop.f32.mrf.mxu0
        %v1937 = vadd.f32 0.0, %v1936
        %1938 = vmatmul.bf16.gmra.mxu0 %v1570
        %v1939 = vpop.f32.mrf.mxu0
        %v1940 = vadd.f32 0.0, %v1939
        %v1941 = vpop.f32.mrf.mxu0
        %v1942 = vadd.f32 0.0, %v1941
        %1943 = vdwg.mxu0
        %1944 = vmatpush.bf16.msra.mxu0 %v1677
        %1945 = vmatpush.bf16.msra.mxu0 %v1674
        %1946 = vmatpush.bf16.msra.mxu0 %v1671
        %1947 = vmatpush.bf16.msra.mxu0 %v1668
        %1948 = vmatpush.bf16.msra.mxu0 %v1665
        %1949 = vmatpush.bf16.msra.mxu0 %v1662
        %1950 = vmatpush.bf16.msra.mxu0 %v1659
        %1951 = vmatpush.bf16.msra.mxu0 %v1656
        %1952 = vmatmul.bf16.gmra.mxu0 %v985
        %v1953 = vpop.f32.mrf.mxu0
        %v1954 = vadd.f32 0.0, %v1953
        %v1955 = vpop.f32.mrf.mxu0
        %v1956 = vadd.f32 0.0, %v1955
        %1957 = vmatmul.bf16.gmra.mxu0 %v986
        %v1958 = vpop.f32.mrf.mxu0
        %v1959 = vadd.f32 0.0, %v1958
        %v1960 = vpop.f32.mrf.mxu0
        %v1961 = vadd.f32 0.0, %v1960
        %1962 = vmatmul.bf16.gmra.mxu0 %v987
        %v1963 = vpop.f32.mrf.mxu0
        %v1964 = vadd.f32 0.0, %v1963
        %v1965 = vpop.f32.mrf.mxu0
        %v1966 = vadd.f32 0.0, %v1965
        %1967 = vmatmul.bf16.gmra.mxu0 %v988
        %v1968 = vpop.f32.mrf.mxu0
        %v1969 = vadd.f32 0.0, %v1968
        %v1970 = vpop.f32.mrf.mxu0
        %v1971 = vadd.f32 0.0, %v1970
        %1972 = vmatmul.bf16.gmra.mxu0 %v989
        %v1973 = vpop.f32.mrf.mxu0
        %v1974 = vadd.f32 0.0, %v1973
        %v1975 = vpop.f32.mrf.mxu0
        %v1976 = vadd.f32 0.0, %v1975
        %1977 = vmatmul.bf16.gmra.mxu0 %v990
        %v1978 = vpop.f32.mrf.mxu0
        %v1979 = vadd.f32 0.0, %v1978
        %v1980 = vpop.f32.mrf.mxu0
        %v1981 = vadd.f32 0.0, %v1980
        %1982 = vmatmul.bf16.gmra.mxu0 %v991
        %v1983 = vpop.f32.mrf.mxu0
        %v1984 = vadd.f32 0.0, %v1983
        %v1985 = vpop.f32.mrf.mxu0
        %v1986 = vadd.f32 0.0, %v1985
        %1987 = vmatmul.bf16.gmra.mxu0 %v992
        %v1988 = vpop.f32.mrf.mxu0
        %v1989 = vadd.f32 0.0, %v1988
        %v1990 = vpop.f32.mrf.mxu0
        %v1991 = vadd.f32 0.0, %v1990
        %1992 = vmatmul.bf16.gmra.mxu0 %v993
        %v1993 = vpop.f32.mrf.mxu0
        %v1994 = vadd.f32 0.0, %v1993
        %v1995 = vpop.f32.mrf.mxu0
        %v1996 = vadd.f32 0.0, %v1995
        %1997 = vmatmul.bf16.gmra.mxu0 %v994
        %v1998 = vpop.f32.mrf.mxu0
        %v1999 = vadd.f32 0.0, %v1998
        %v2000 = vpop.f32.mrf.mxu0
        %v2001 = vadd.f32 0.0, %v2000
        %2002 = vmatmul.bf16.gmra.mxu0 %v995
        %v2003 = vpop.f32.mrf.mxu0
        %v2004 = vadd.f32 0.0, %v2003
        %v2005 = vpop.f32.mrf.mxu0
        %v2006 = vadd.f32 0.0, %v2005
        %2007 = vmatmul.bf16.gmra.mxu0 %v996
        %v2008 = vpop.f32.mrf.mxu0
        %v2009 = vadd.f32 0.0, %v2008
        %v2010 = vpop.f32.mrf.mxu0
        %v2011 = vadd.f32 0.0, %v2010
        %2012 = vmatmul.bf16.gmra.mxu0 %v997
        %v2013 = vpop.f32.mrf.mxu0
        %v2014 = vadd.f32 0.0, %v2013
        %v2015 = vpop.f32.mrf.mxu0
        %v2016 = vadd.f32 0.0, %v2015
        %2017 = vmatmul.bf16.gmra.mxu0 %v998
        %v2018 = vpop.f32.mrf.mxu0
        %v2019 = vadd.f32 0.0, %v2018
        %v2020 = vpop.f32.mrf.mxu0
        %v2021 = vadd.f32 0.0, %v2020
        %2022 = vmatmul.bf16.gmra.mxu0 %v999
        %v2023 = vpop.f32.mrf.mxu0
        %v2024 = vadd.f32 0.0, %v2023
        %v2025 = vpop.f32.mrf.mxu0
        %v2026 = vadd.f32 0.0, %v2025
        %2027 = vmatmul.bf16.gmra.mxu0 %v1000
        %v2028 = vpop.f32.mrf.mxu0
        %v2029 = vadd.f32 0.0, %v2028
        %v2030 = vpop.f32.mrf.mxu0
        %v2031 = vadd.f32 0.0, %v2030
        %2032 = vmatmul.bf16.gmra.mxu0 %v1001
        %v2033 = vpop.f32.mrf.mxu0
        %v2034 = vadd.f32 0.0, %v2033
        %v2035 = vpop.f32.mrf.mxu0
        %v2036 = vadd.f32 0.0, %v2035
        %2037 = vmatmul.bf16.gmra.mxu0 %v1002
        %v2038 = vpop.f32.mrf.mxu0
        %v2039 = vadd.f32 0.0, %v2038
        %v2040 = vpop.f32.mrf.mxu0
        %v2041 = vadd.f32 0.0, %v2040
        %2042 = vmatmul.bf16.gmra.mxu0 %v1003
        %v2043 = vpop.f32.mrf.mxu0
        %v2044 = vadd.f32 0.0, %v2043
        %v2045 = vpop.f32.mrf.mxu0
        %v2046 = vadd.f32 0.0, %v2045
        %2047 = vmatmul.bf16.gmra.mxu0 %v1004
        %v2048 = vpop.f32.mrf.mxu0
        %v2049 = vadd.f32 0.0, %v2048
        %v2050 = vpop.f32.mrf.mxu0
        %v2051 = vadd.f32 0.0, %v2050
        %2052 = vmatmul.bf16.gmra.mxu0 %v1005
        %v2053 = vpop.f32.mrf.mxu0
        %v2054 = vadd.f32 0.0, %v2053
        %v2055 = vpop.f32.mrf.mxu0
        %v2056 = vadd.f32 0.0, %v2055
        %2057 = vmatmul.bf16.gmra.mxu0 %v1568
        %v2058 = vpop.f32.mrf.mxu0
        %v2059 = vadd.f32 0.0, %v2058
        %v2060 = vpop.f32.mrf.mxu0
        %v2061 = vadd.f32 0.0, %v2060
        %2062 = vmatmul.bf16.gmra.mxu0 %v1569
        %v2063 = vpop.f32.mrf.mxu0
        %v2064 = vadd.f32 0.0, %v2063
        %v2065 = vpop.f32.mrf.mxu0
        %v2066 = vadd.f32 0.0, %v2065
        %2067 = vmatmul.bf16.gmra.mxu0 %v1570
        %v2068 = vpop.f32.mrf.mxu0
        %v2069 = vadd.f32 0.0, %v2068
        %v2070 = vpop.f32.mrf.mxu0
        %v2071 = vadd.f32 0.0, %v2070
        %2072 = vdwg.mxu0
        %v2073 = vadd.f32 %v1168, %v1712
        %v2074 = vadd.f32 %v1281, %v1825
        %v2075 = vadd.f32 %v1410, %v1954
        %v2076 = vadd.f32 %v1170, %v1714
        %v2077 = vadd.f32 %v1283, %v1827
        %v2078 = vadd.f32 %v1412, %v1956
        %v2079 = vadd.f32 %v1286, %v1830
        %v2080 = vadd.f32 %v1415, %v1959
        %v2081 = vadd.f32 %v1174, %v1718
        %v2082 = vadd.f32 %v1288, %v1832
        %v2083 = vadd.f32 %v1417, %v1961
        %v2084 = vadd.f32 %v1177, %v1721
        %v2085 = vadd.f32 %v1291, %v1835
        %v2086 = vadd.f32 %v1420, %v1964
        %v2087 = vadd.f32 %v1293, %v1837
        %v2088 = vadd.f32 %v1422, %v1966
        %v2089 = vadd.f32 %v1181, %v1725
        %v2090 = vadd.f32 %v1296, %v1840
        %v2091 = vadd.f32 %v1425, %v1969
        %v2092 = vadd.f32 %v1183, %v1727
        %v2093 = vadd.f32 %v1298, %v1842
        %v2094 = vadd.f32 %v1427, %v1971
        %v2095 = vadd.f32 %v1301, %v1845
        %v2096 = vadd.f32 %v1430, %v1974
        %v2097 = vadd.f32 %v1187, %v1731
        %v2098 = vadd.f32 %v1303, %v1847
        %v2099 = vadd.f32 %v1432, %v1976
        %v2100 = vadd.f32 %v1190, %v1734
        %v2101 = vadd.f32 %v1306, %v1850
        %v2102 = vadd.f32 %v1435, %v1979
        %v2103 = vadd.f32 %v1308, %v1852
        %v2104 = vadd.f32 %v1437, %v1981
        %v2105 = vadd.f32 %v1194, %v1738
        %v2106 = vadd.f32 %v1311, %v1855
        %v2107 = vadd.f32 %v1440, %v1984
        %v2108 = vadd.f32 %v1196, %v1740
        %v2109 = vadd.f32 %v1313, %v1857
        %v2110 = vadd.f32 %v1442, %v1986
        %v2111 = vadd.f32 %v1316, %v1860
        %v2112 = vadd.f32 %v1445, %v1989
        %v2113 = vadd.f32 %v1200, %v1744
        %v2114 = vadd.f32 %v1318, %v1862
        %v2115 = vadd.f32 %v1447, %v1991
        %v2116 = vadd.f32 %v1203, %v1747
        %v2117 = vadd.f32 %v1321, %v1865
        %v2118 = vadd.f32 %v1450, %v1994
        %v2119 = vadd.f32 %v1323, %v1867
        %v2120 = vadd.f32 %v1452, %v1996
        %v2121 = vadd.f32 %v1207, %v1751
        %v2122 = vadd.f32 %v1326, %v1870
        %v2123 = vadd.f32 %v1455, %v1999
        %v2124 = vadd.f32 %v1209, %v1753
        %v2125 = vadd.f32 %v1328, %v1872
        %v2126 = vadd.f32 %v1457, %v2001
        %v2127 = vadd.f32 %v1331, %v1875
        %v2128 = vadd.f32 %v1460, %v2004
        %v2129 = vadd.f32 %v1213, %v1757
        %v2130 = vadd.f32 %v1333, %v1877
        %v2131 = vadd.f32 %v1462, %v2006
        %v2132 = vadd.f32 %v1216, %v1760
        %v2133 = vadd.f32 %v1336, %v1880
        %v2134 = vadd.f32 %v1465, %v2009
        %v2135 = vadd.f32 %v1338, %v1882
        %v2136 = vadd.f32 %v1467, %v2011
        %v2137 = vadd.f32 %v1220, %v1764
        %v2138 = vadd.f32 %v1341, %v1885
        %v2139 = vadd.f32 %v1470, %v2014
        %v2140 = vadd.f32 %v1222, %v1766
        %v2141 = vadd.f32 %v1343, %v1887
        %v2142 = vadd.f32 %v1472, %v2016
        %v2143 = vadd.f32 %v1346, %v1890
        %v2144 = vadd.f32 %v1475, %v2019
        %v2145 = vadd.f32 %v1226, %v1770
        %v2146 = vadd.f32 %v1348, %v1892
        %v2147 = vadd.f32 %v1477, %v2021
        %v2148 = vadd.f32 %v1229, %v1773
        %v2149 = vadd.f32 %v1351, %v1895
        %v2150 = vadd.f32 %v1480, %v2024
        %v2151 = vadd.f32 %v1353, %v1897
        %v2152 = vadd.f32 %v1482, %v2026
        %v2153 = vadd.f32 %v1233, %v1777
        %v2154 = vadd.f32 %v1356, %v1900
        %v2155 = vadd.f32 %v1485, %v2029
        %v2156 = vadd.f32 %v1235, %v1779
        %v2157 = vadd.f32 %v1358, %v1902
        %v2158 = vadd.f32 %v1487, %v2031
        %v2159 = vadd.f32 %v1361, %v1905
        %v2160 = vadd.f32 %v1490, %v2034
        %v2161 = vadd.f32 %v1239, %v1783
        %v2162 = vadd.f32 %v1363, %v1907
        %v2163 = vadd.f32 %v1492, %v2036
        %v2164 = vadd.f32 %v1242, %v1786
        %v2165 = vadd.f32 %v1366, %v1910
        %v2166 = vadd.f32 %v1495, %v2039
        %v2167 = vadd.f32 %v1368, %v1912
        %v2168 = vadd.f32 %v1497, %v2041
        %v2169 = vadd.f32 %v1246, %v1790
        %v2170 = vadd.f32 %v1371, %v1915
        %v2171 = vadd.f32 %v1500, %v2044
        %v2172 = vadd.f32 %v1248, %v1792
        %v2173 = vadd.f32 %v1373, %v1917
        %v2174 = vadd.f32 %v1502, %v2046
        %v2175 = vadd.f32 %v1376, %v1920
        %v2176 = vadd.f32 %v1505, %v2049
        %v2177 = vadd.f32 %v1252, %v1796
        %v2178 = vadd.f32 %v1378, %v1922
        %v2179 = vadd.f32 %v1507, %v2051
        %v2180 = vadd.f32 %v1255, %v1799
        %v2181 = vadd.f32 %v1381, %v1925
        %v2182 = vadd.f32 %v1510, %v2054
        %v2183 = vadd.f32 %v1383, %v1927
        %v2184 = vadd.f32 %v1512, %v2056
        %v2185 = vadd.f32 %v1259, %v1803
        %v2186 = vadd.f32 %v1386, %v1930
        %v2187 = vadd.f32 %v1515, %v2059
        %v2188 = vadd.f32 %v1261, %v1805
        %v2189 = vadd.f32 %v1388, %v1932
        %v2190 = vadd.f32 %v1517, %v2061
        %v2191 = vadd.f32 %v1391, %v1935
        %v2192 = vadd.f32 %v1520, %v2064
        %v2193 = vadd.f32 %v1265, %v1809
        %v2194 = vadd.f32 %v1393, %v1937
        %v2195 = vadd.f32 %v1522, %v2066
        %v2196 = vadd.f32 %v1268, %v1812
        %v2197 = vadd.f32 %v1396, %v1940
        %v2198 = vadd.f32 %v1525, %v2069
        %v2199 = vadd.f32 %v1398, %v1942
        %v2200 = vadd.f32 %v1527, %v2071
        %v2201 = vrot.slane %v2074, 1
        %v2202 = vrot.slane %v2077, 1
        %v2203 = vrot.slane %v2079, 1
        %v2204 = vrot.slane %v2082, 1
        %v2205 = vrot.slane %v2085, 1
        %v2206 = vrot.slane %v2087, 1
        %v2207 = vrot.slane %v2090, 1
        %v2208 = vrot.slane %v2093, 1
        %v2209 = vrot.slane %v2095, 1
        %v2210 = vrot.slane %v2098, 1
        %v2211 = vrot.slane %v2101, 1
        %v2212 = vrot.slane %v2103, 1
        %v2213 = vrot.slane %v2106, 1
        %v2214 = vrot.slane %v2109, 1
        %v2215 = vrot.slane %v2111, 1
        %v2216 = vrot.slane %v2114, 1
        %v2217 = vrot.slane %v2117, 1
        %v2218 = vrot.slane %v2119, 1
        %v2219 = vrot.slane %v2122, 1
        %v2220 = vrot.slane %v2125, 1
        %v2221 = vrot.slane %v2127, 1
        %v2222 = vrot.slane %v2130, 1
        %v2223 = vrot.slane %v2133, 1
        %v2224 = vrot.slane %v2135, 1
        %v2225 = vrot.slane %v2138, 1
        %v2226 = vrot.slane %v2141, 1
        %v2227 = vrot.slane %v2143, 1
        %v2228 = vrot.slane %v2146, 1
        %v2229 = vrot.slane %v2149, 1
        %v2230 = vrot.slane %v2151, 1
        %v2231 = vrot.slane %v2154, 1
        %v2232 = vrot.slane %v2157, 1
        %v2233 = vrot.slane %v2159, 1
        %v2234 = vrot.slane %v2162, 1
        %v2235 = vrot.slane %v2165, 1
        %v2236 = vrot.slane %v2167, 1
        %v2237 = vrot.slane %v2170, 1
        %v2238 = vrot.slane %v2173, 1
        %v2239 = vrot.slane %v2175, 1
        %v2240 = vrot.slane %v2178, 1
        %v2241 = vrot.slane %v2181, 1
        %v2242 = vrot.slane %v2183, 1
        %v2243 = vrot.slane %v2186, 1
        %v2244 = vrot.slane %v2189, 1
        %v2245 = vrot.slane %v2191, 1
        %v2246 = vrot.slane %v2194, 1
        %v2247 = vrot.slane %v2197, 1
        %v2248 = vrot.slane %v2199, 1
        %v2249 = vlaneseq
        %v2250 = vshrl.u32 %v2249, 7
        %vm2251 = vcmp.lt.s32.totalorder %v2250, 7
        %v2252 = vsel %vm2251, %v2247, %v2248
        %v2253 = vsel %vm2251, %v2246, %v2247
        %v2254 = vsel %vm2251, %v2244, %v2245
        %v2255 = vsel %vm2251, %v2243, %v2244
        %v2256 = vsel %vm2251, %v2241, %v2242
        %v2257 = vsel %vm2251, %v2240, %v2241
        %v2258 = vsel %vm2251, %v2238, %v2239
        %v2259 = vsel %vm2251, %v2237, %v2238
        %v2260 = vsel %vm2251, %v2235, %v2236
        %v2261 = vsel %vm2251, %v2234, %v2235
        %v2262 = vsel %vm2251, %v2232, %v2233
        %v2263 = vsel %vm2251, %v2231, %v2232
        %v2264 = vsel %vm2251, %v2229, %v2230
        %v2265 = vsel %vm2251, %v2228, %v2229
        %v2266 = vsel %vm2251, %v2226, %v2227
        %v2267 = vsel %vm2251, %v2225, %v2226
        %v2268 = vsel %vm2251, %v2223, %v2224
        %v2269 = vsel %vm2251, %v2222, %v2223
        %v2270 = vsel %vm2251, %v2220, %v2221
        %v2271 = vsel %vm2251, %v2219, %v2220
        %v2272 = vsel %vm2251, %v2217, %v2218
        %v2273 = vsel %vm2251, %v2216, %v2217
        %v2274 = vsel %vm2251, %v2214, %v2215
        %v2275 = vsel %vm2251, %v2213, %v2214
        %v2276 = vsel %vm2251, %v2211, %v2212
        %v2277 = vsel %vm2251, %v2210, %v2211
        %v2278 = vsel %vm2251, %v2208, %v2209
        %v2279 = vsel %vm2251, %v2207, %v2208
        %v2280 = vsel %vm2251, %v2205, %v2206
        %v2281 = vsel %vm2251, %v2204, %v2205
        %v2282 = vsel %vm2251, %v2202, %v2203
        %v2283 = vsel %vm2251, %v2201, %v2202
        %v2284 = vadd.f32 %v2073, %v2283
        %v2285 = vadd.f32 %v2076, %v2282
        %v2286 = vadd.f32 %v2081, %v2281
        %v2287 = vadd.f32 %v2084, %v2280
        %v2288 = vadd.f32 %v2089, %v2279
        %v2289 = vadd.f32 %v2092, %v2278
        %v2290 = vadd.f32 %v2097, %v2277
        %v2291 = vadd.f32 %v2100, %v2276
        %v2292 = vadd.f32 %v2105, %v2275
        %v2293 = vadd.f32 %v2108, %v2274
        %v2294 = vadd.f32 %v2113, %v2273
        %v2295 = vadd.f32 %v2116, %v2272
        %v2296 = vadd.f32 %v2121, %v2271
        %v2297 = vadd.f32 %v2124, %v2270
        %v2298 = vadd.f32 %v2129, %v2269
        %v2299 = vadd.f32 %v2132, %v2268
        %v2300 = vadd.f32 %v2137, %v2267
        %v2301 = vadd.f32 %v2140, %v2266
        %v2302 = vadd.f32 %v2145, %v2265
        %v2303 = vadd.f32 %v2148, %v2264
        %v2304 = vadd.f32 %v2153, %v2263
        %v2305 = vadd.f32 %v2156, %v2262
        %v2306 = vadd.f32 %v2161, %v2261
        %v2307 = vadd.f32 %v2164, %v2260
        %v2308 = vadd.f32 %v2169, %v2259
        %v2309 = vadd.f32 %v2172, %v2258
        %v2310 = vadd.f32 %v2177, %v2257
        %v2311 = vadd.f32 %v2180, %v2256
        %v2312 = vadd.f32 %v2185, %v2255
        %v2313 = vadd.f32 %v2188, %v2254
        %v2314 = vadd.f32 %v2193, %v2253
        %v2315 = vadd.f32 %v2196, %v2252
        %v2316 = vrot.slane %v2075, 2
        %v2317 = vrot.slane %v2078, 2
        %v2318 = vrot.slane %v2080, 2
        %v2319 = vrot.slane %v2083, 2
        %v2320 = vrot.slane %v2086, 2
        %v2321 = vrot.slane %v2088, 2
        %v2322 = vrot.slane %v2091, 2
        %v2323 = vrot.slane %v2094, 2
        %v2324 = vrot.slane %v2096, 2
        %v2325 = vrot.slane %v2099, 2
        %v2326 = vrot.slane %v2102, 2
        %v2327 = vrot.slane %v2104, 2
        %v2328 = vrot.slane %v2107, 2
        %v2329 = vrot.slane %v2110, 2
        %v2330 = vrot.slane %v2112, 2
        %v2331 = vrot.slane %v2115, 2
        %v2332 = vrot.slane %v2118, 2
        %v2333 = vrot.slane %v2120, 2
        %v2334 = vrot.slane %v2123, 2
        %v2335 = vrot.slane %v2126, 2
        %v2336 = vrot.slane %v2128, 2
        %v2337 = vrot.slane %v2131, 2
        %v2338 = vrot.slane %v2134, 2
        %v2339 = vrot.slane %v2136, 2
        %v2340 = vrot.slane %v2139, 2
        %v2341 = vrot.slane %v2142, 2
        %v2342 = vrot.slane %v2144, 2
        %v2343 = vrot.slane %v2147, 2
        %v2344 = vrot.slane %v2150, 2
        %v2345 = vrot.slane %v2152, 2
        %v2346 = vrot.slane %v2155, 2
        %v2347 = vrot.slane %v2158, 2
        %v2348 = vrot.slane %v2160, 2
        %v2349 = vrot.slane %v2163, 2
        %v2350 = vrot.slane %v2166, 2
        %v2351 = vrot.slane %v2168, 2
        %v2352 = vrot.slane %v2171, 2
        %v2353 = vrot.slane %v2174, 2
        %v2354 = vrot.slane %v2176, 2
        %v2355 = vrot.slane %v2179, 2
        %v2356 = vrot.slane %v2182, 2
        %v2357 = vrot.slane %v2184, 2
        %v2358 = vrot.slane %v2187, 2
        %v2359 = vrot.slane %v2190, 2
        %v2360 = vrot.slane %v2192, 2
        %v2361 = vrot.slane %v2195, 2
        %v2362 = vrot.slane %v2198, 2
        %v2363 = vrot.slane %v2200, 2
        %vm2364 = vcmp.lt.s32.totalorder %v2250, 6
        %v2365 = vsel %vm2364, %v2362, %v2363
        %v2366 = vsel %vm2364, %v2361, %v2362
        %v2367 = vsel %vm2364, %v2359, %v2360
        %v2368 = vsel %vm2364, %v2358, %v2359
        %v2369 = vsel %vm2364, %v2356, %v2357
        %v2370 = vsel %vm2364, %v2355, %v2356
        %v2371 = vsel %vm2364, %v2353, %v2354
        %v2372 = vsel %vm2364, %v2352, %v2353
        %v2373 = vsel %vm2364, %v2350, %v2351
        %v2374 = vsel %vm2364, %v2349, %v2350
        %v2375 = vsel %vm2364, %v2347, %v2348
        %v2376 = vsel %vm2364, %v2346, %v2347
        %v2377 = vsel %vm2364, %v2344, %v2345
        %v2378 = vsel %vm2364, %v2343, %v2344
        %v2379 = vsel %vm2364, %v2341, %v2342
        %v2380 = vsel %vm2364, %v2340, %v2341
        %v2381 = vsel %vm2364, %v2338, %v2339
        %v2382 = vsel %vm2364, %v2337, %v2338
        %v2383 = vsel %vm2364, %v2335, %v2336
        %v2384 = vsel %vm2364, %v2334, %v2335
        %v2385 = vsel %vm2364, %v2332, %v2333
        %v2386 = vsel %vm2364, %v2331, %v2332
        %v2387 = vsel %vm2364, %v2329, %v2330
        %v2388 = vsel %vm2364, %v2328, %v2329
        %v2389 = vsel %vm2364, %v2326, %v2327
        %v2390 = vsel %vm2364, %v2325, %v2326
        %v2391 = vsel %vm2364, %v2323, %v2324
        %v2392 = vsel %vm2364, %v2322, %v2323
        %v2393 = vsel %vm2364, %v2320, %v2321
        %v2394 = vsel %vm2364, %v2319, %v2320
        %v2395 = vsel %vm2364, %v2317, %v2318
        %v2396 = vsel %vm2364, %v2316, %v2317
        %v2397 = vadd.f32 %v2284, %v2396
        %v2398 = vadd.f32 %v2285, %v2395
        %v2399 = vadd.f32 %v2286, %v2394
        %v2400 = vadd.f32 %v2287, %v2393
        %v2401 = vadd.f32 %v2288, %v2392
        %v2402 = vadd.f32 %v2289, %v2391
        %v2403 = vadd.f32 %v2290, %v2390
        %v2404 = vadd.f32 %v2291, %v2389
        %v2405 = vadd.f32 %v2292, %v2388
        %v2406 = vadd.f32 %v2293, %v2387
        %v2407 = vadd.f32 %v2294, %v2386
        %v2408 = vadd.f32 %v2295, %v2385
        %v2409 = vadd.f32 %v2296, %v2384
        %v2410 = vadd.f32 %v2297, %v2383
        %v2411 = vadd.f32 %v2298, %v2382
        %v2412 = vadd.f32 %v2299, %v2381
        %v2413 = vadd.f32 %v2300, %v2380
        %v2414 = vadd.f32 %v2301, %v2379
        %v2415 = vadd.f32 %v2302, %v2378
        %v2416 = vadd.f32 %v2303, %v2377
        %v2417 = vadd.f32 %v2304, %v2376
        %v2418 = vadd.f32 %v2305, %v2375
        %v2419 = vadd.f32 %v2306, %v2374
        %v2420 = vadd.f32 %v2307, %v2373
        %v2421 = vadd.f32 %v2308, %v2372
        %v2422 = vadd.f32 %v2309, %v2371
        %v2423 = vadd.f32 %v2310, %v2370
        %v2424 = vadd.f32 %v2311, %v2369
        %v2425 = vadd.f32 %v2312, %v2368
        %v2426 = vadd.f32 %v2313, %v2367
        %v2427 = vadd.f32 %v2314, %v2366
        %v2428 = vadd.f32 %v2315, %v2365
        %v2429 = vld [vmem:[%s2] sm:$0x1]
        %v2431 = vperm.slane %v2429, 0
        %v2433 = vadd.f32 %v2397, %v2431
        %v2434 = vadd.f32 %v2398, %v2431
        %v2435 = vadd.f32 %v2399, %v2431
        %v2436 = vadd.f32 %v2400, %v2431
        %v2437 = vadd.f32 %v2401, %v2431
        %v2438 = vadd.f32 %v2402, %v2431
        %v2439 = vadd.f32 %v2403, %v2431
        %v2440 = vadd.f32 %v2404, %v2431
        %v2441 = vadd.f32 %v2405, %v2431
        %v2442 = vadd.f32 %v2406, %v2431
        %v2443 = vadd.f32 %v2407, %v2431
        %v2444 = vadd.f32 %v2408, %v2431
        %v2445 = vadd.f32 %v2409, %v2431
        %v2446 = vadd.f32 %v2410, %v2431
        %v2447 = vadd.f32 %v2411, %v2431
        %v2448 = vadd.f32 %v2412, %v2431
        %v2449 = vadd.f32 %v2413, %v2431
        %v2450 = vadd.f32 %v2414, %v2431
        %v2451 = vadd.f32 %v2415, %v2431
        %v2452 = vadd.f32 %v2416, %v2431
        %v2453 = vadd.f32 %v2417, %v2431
        %v2454 = vadd.f32 %v2418, %v2431
        %v2455 = vadd.f32 %v2419, %v2431
        %v2456 = vadd.f32 %v2420, %v2431
        %v2457 = vadd.f32 %v2421, %v2431
        %v2458 = vadd.f32 %v2422, %v2431
        %v2459 = vadd.f32 %v2423, %v2431
        %v2460 = vadd.f32 %v2424, %v2431
        %v2461 = vadd.f32 %v2425, %v2431
        %v2462 = vadd.f32 %v2426, %v2431
        %v2463 = vadd.f32 %v2427, %v2431
        %v2464 = vadd.f32 %v2428, %v2431
        %v2465 = vmax.f32 %v2433, 0.0
        %v2466 = vmax.f32 %v2434, 0.0
        %v2467 = vmax.f32 %v2435, 0.0
        %v2468 = vmax.f32 %v2436, 0.0
        %v2469 = vmax.f32 %v2437, 0.0
        %v2470 = vmax.f32 %v2438, 0.0
        %v2471 = vmax.f32 %v2439, 0.0
        %v2472 = vmax.f32 %v2440, 0.0
        %v2473 = vmax.f32 %v2441, 0.0
        %v2474 = vmax.f32 %v2442, 0.0
        %v2475 = vmax.f32 %v2443, 0.0
        %v2476 = vmax.f32 %v2444, 0.0
        %v2477 = vmax.f32 %v2445, 0.0
        %v2478 = vmax.f32 %v2446, 0.0
        %v2479 = vmax.f32 %v2447, 0.0
        %v2480 = vmax.f32 %v2448, 0.0
        %v2481 = vmax.f32 %v2449, 0.0
        %v2482 = vmax.f32 %v2450, 0.0
        %v2483 = vmax.f32 %v2451, 0.0
        %v2484 = vmax.f32 %v2452, 0.0
        %v2485 = vmax.f32 %v2453, 0.0
        %v2486 = vmax.f32 %v2454, 0.0
        %v2487 = vmax.f32 %v2455, 0.0
        %v2488 = vmax.f32 %v2456, 0.0
        %v2489 = vmax.f32 %v2457, 0.0
        %v2490 = vmax.f32 %v2458, 0.0
        %v2491 = vmax.f32 %v2459, 0.0
        %v2492 = vmax.f32 %v2460, 0.0
        %v2493 = vmax.f32 %v2461, 0.0
        %v2494 = vmax.f32 %v2462, 0.0
        %v2495 = vmax.f32 %v2463, 0.0
        %v2496 = vmax.f32 %v2464, 0.0
        %2497 = vst [vmem:[%s153] sm:$0xff] %v2465
        %2498 = vst [vmem:[%s153 + $0x8] sm:$0xff] %v2466
        %2499 = vst [vmem:[%s153 + $0x10] sm:$0xff] %v2467
        %2500 = vst [vmem:[%s153 + $0x18] sm:$0xff] %v2468
        %2501 = vst [vmem:[%s153 + $0x20] sm:$0xff] %v2469
        %2502 = vst [vmem:[%s153 + $0x28] sm:$0xff] %v2470
        %2503 = vst [vmem:[%s153 + $0x30] sm:$0xff] %v2471
        %2504 = vst [vmem:[%s153 + $0x38] sm:$0xff] %v2472
        %2505 = vst [vmem:[%s153 + $0x40] sm:$0xff] %v2473
        %2506 = vst [vmem:[%s153 + $0x48] sm:$0xff] %v2474
        %2507 = vst [vmem:[%s153 + $0x50] sm:$0xff] %v2475
        %2508 = vst [vmem:[%s153 + $0x58] sm:$0xff] %v2476
        %2509 = vst [vmem:[%s153 + $0x60] sm:$0xff] %v2477
        %2510 = vst [vmem:[%s153 + $0x68] sm:$0xff] %v2478
        %2511 = vst [vmem:[%s153 + $0x70] sm:$0xff] %v2479
        %2512 = vst [vmem:[%s153 + $0x78] sm:$0xff] %v2480
        %2513 = vst [vmem:[%s153 + $0x80] sm:$0xff] %v2481
        %2514 = vst [vmem:[%s153 + $0x88] sm:$0xff] %v2482
        %2515 = vst [vmem:[%s153 + $0x90] sm:$0xff] %v2483
        %2516 = vst [vmem:[%s153 + $0x98] sm:$0xff] %v2484
        %2517 = vst [vmem:[%s153 + $0xa0] sm:$0xff] %v2485
        %2518 = vst [vmem:[%s153 + $0xa8] sm:$0xff] %v2486
        %2519 = vst [vmem:[%s153 + $0xb0] sm:$0xff] %v2487
        %2520 = vst [vmem:[%s153 + $0xb8] sm:$0xff] %v2488
        %2521 = vst [vmem:[%s153 + $0xc0] sm:$0xff] %v2489
        %2522 = vst [vmem:[%s153 + $0xc8] sm:$0xff] %v2490
        %2523 = vst [vmem:[%s153 + $0xd0] sm:$0xff] %v2491
        %2524 = vst [vmem:[%s153 + $0xd8] sm:$0xff] %v2492
        %2525 = vst [vmem:[%s153 + $0xe0] sm:$0xff] %v2493
        %2526 = vst [vmem:[%s153 + $0xe8] sm:$0xff] %v2494
        %2527 = vst [vmem:[%s153 + $0xf0] sm:$0xff] %v2495
        %2528 = vst [vmem:[%s153 + $0xf8] sm:$0xff] %v2496
        %s2529 = sand.u32 %s82, 1
        %s2530 = scalar_lea.sflag [#allocation6], %s2529
        %s2531 = sand.u32 %s82, 1
        %s2532 = smul.addr %s2531, 256
        %s2533 = scalar_lea.vmem [#allocation7], %s2532
        // Predicated region
        $region49: #{tpu_custom_call.1} parent=27 // pred_check
          %p2534 = pneg %p92
        $region50: #{tpu_custom_call.1} parent=27 // pred_check_branch
          %2536 = sbr.rel (%p2534) target = $region52
        $region51: #{tpu_custom_call.1} parent=27 // pred_region
          %s2537 = smul.u32 16, %s23
          %2539 = vsyncadd %s2530, 0
          %s2540 = smul.addr %s2537, 2
          %s2541 = smul.addr %s22, 32
          %s2542 = sadd.s32 %s2540, %s2541
          %s2543 = smul.addr %s2542, 8
          %s2544 = scalar_lea.hbm %s3, %s2543
          %s2545 = sshll.u32 %s2533, 4
          %s2546 = int_to_ptr.vmem [resolvable:$true] %s2545
          %s2547 = sshll.u32 %s2544, 4
          %s2548 = int_to_ptr.hbm [resolvable:$true] %s2547
          %2553 = dma.vmem_to_hbm [thread:$0]  %s2546, 4096, %s2548, %s2530, 128, 128, 8
        $region52: #{tpu_custom_call.1} parent=27 // pred_fallthru
          _
      $region28: #{tpu_custom_call.1} parent=5 // pred_fallthru
        _
      %p2554 = scmp.le.s32.totalorder 2, %s13
      // Predicated region
      $region53: #{tpu_custom_call.1} parent=5 // pred_check
        %p2555 = pneg %p2554
      $region54: #{tpu_custom_call.1} parent=5 // pred_check_branch
        %2557 = sbr.rel (%p2555) target = $region56
      $region55: #{tpu_custom_call.1} parent=5 // pred_region
        %s2558 = ssub.s32 %s13, 2
        // Predicated region
        $region57: #{tpu_custom_call.1} parent=55 // pred_check
          %p2559 = pneg %p98
        $region58: #{tpu_custom_call.1} parent=55 // pred_check_branch
          %2561 = sbr.rel (%p2559) target = $region60
        $region59: #{tpu_custom_call.1} parent=55 // pred_region
          %s2562 = sand.u32 %s83, 1
          %s2563 = scalar_lea.sflag [#allocation6], %s2562
          %s2564 = sand.u32 %s83, 1
          %s2565 = smul.addr %s2564, 256
          %s2566 = scalar_lea.vmem [#allocation7], %s2565
          %2568 = dma.done %s2563, 4096
        $region60: #{tpu_custom_call.1} parent=55 // pred_fallthru
          _
      $region56: #{tpu_custom_call.1} parent=5 // pred_fallthru
        _
    $region6: #{tpu_custom_call.1} parent=1 // loop_footer
      %s17 = sadd.s32 1, %s13
    $region7: #{tpu_custom_call.1} parent=1 // loop_footer_branch
      %12 = sbr.rel target = $region3
    $region8: #{tpu_custom_call.1} parent=1 // loop_exit
      _
    %2569 = vsyncpa [#allocation5], 1
    %s2570 = scalar_lea.sflag [#allocation5], 1
    %2571 = vsyncpa %s2570, 1
    %2572 = vsyncpa [#allocation6], 1
    %s2573 = scalar_lea.sflag [#allocation6], 1
    %2574 = vsyncpa %s2573, 1
  %2575 = vsyncmov [#allocation3]
  %s2576 = vpop.sfrf %2575
  %p2577 = scmp.eq.s32.totalorder %s2576, 0
  %p2578 = pneg %p2577
  %2580 = shalt.err (%p2578)
  %s2581 = scalar_lea.sflag [#allocation3], 1
  %2582 = vsyncmov %s2581
  %s2583 = vpop.sfrf %2582
  %p2584 = scmp.eq.s32.totalorder %s2583, 0
  %p2585 = pneg %p2584
  %2587 = shalt.err (%p2585)

</llo_original>
